<compile_context>
chip_gen: v6e
topology: v6e:2x2x1
jax: 0.10.0
libtpu: 0.0.40
codegen_flags: <defaults>
</compile_context>

<pallas_src>
import jax
import jax.numpy as jnp
from jax.experimental import pallas as pl
from jax.experimental.pallas import tpu as pltpu


# (fan_in, fan_out) per Linear, matching the PyTorch module.
_DIMS = [
    (1, 20), (20, 10), (10, 5), (5, 3),     # encoder
    (3, 5), (5, 10), (10, 20), (20, 1),     # decoder
]
_ROW_STRIDE = 24        # 8-aligned row offset per layer inside the weight slab
_W_COLS = 32            # lane-padded column count of the weight slab


# ---------------------------------------------------------------------------
# Kernel: full encoder + decoder forward for one batch tile (batch on lanes).
# ---------------------------------------------------------------------------
def _autoenc_kernel(x_ref, w_ref, b_ref, out_ref):
    x = x_ref[...]                                            # (1, TB) float32

    def w(i, n_out, n_in):
        r = _ROW_STRIDE * i
        return w_ref[r:r + n_out, 0:n_in]                     # (n_out, n_in)

    def b(i, n_out):
        return b_ref[0:n_out, i:i + 1]                        # (n_out, 1)

    def lin(i, n_out, n_in, h):
        return jnp.dot(w(i, n_out, n_in), h,
                       preferred_element_type=jnp.float32) + b(i, n_out)

    # --- Encoder: 1 -> 20 -> 10 -> 5 -> 3 -----------------------------------
    # Layer 1 is a rank-1 outer product: VPU broadcast-MAC, not the MXU.
    h = jnp.maximum(w(0, 20, 1) * x + b(0, 20), 0.0)          # (20, TB)
    h = jnp.maximum(lin(1, 10, 20, h), 0.0)                   # (10, TB)
    h = jnp.maximum(lin(2, 5, 10, h), 0.0)                    # (5, TB)
    latent = lin(3, 3, 5, h)                                  # (3, TB)
    out_ref[0:3, :] = latent.astype(out_ref.dtype)

    # --- Decoder: 3 -> 5 -> 10 -> 20 -> 1 -----------------------------------
    d = jnp.maximum(lin(4, 5, 3, latent), 0.0)                # (5, TB)
    d = jnp.maximum(lin(5, 10, 5, d), 0.0)                    # (10, TB)
    d = jnp.maximum(lin(6, 20, 10, d), 0.0)                   # (20, TB)
    # Layer 8 is a single dot product per sample: multiply + sublane (XLU)
    # reduce instead of a 20x1 MXU matmul. w8 is stored pre-transposed (20,1).
    w8 = w(7, 20, 1)                                          # (20, 1)
    recon = jnp.sum(w8 * d, axis=0, keepdims=True) + b(7, 1)  # (1, TB)
    out_ref[3:4, :] = recon.astype(out_ref.dtype)


# ---------------------------------------------------------------------------
# Host-side packing of the 8 Linear layers into two small slabs.
# ---------------------------------------------------------------------------
def _pack_params(params):
    """params: list of 8 (w, b) pairs, w is (out, in) [PyTorch layout], b is (out,)."""
    w_slab = jnp.zeros((_ROW_STRIDE * 8, _W_COLS), jnp.float32)
    b_slab = jnp.zeros((_ROW_STRIDE, 8), jnp.float32)
    for i, (wi, bi) in enumerate(params):
        n_out, n_in = wi.shape
        r = _ROW_STRIDE * i
        if i == 7:
            # Last layer stored pre-transposed as a (20, 1) column for the
            # VPU-multiply / XLU-reduce path inside the kernel.
            w_slab = w_slab.at[r:r + n_in, 0:n_out].set(wi.T)
        else:
            w_slab = w_slab.at[r:r + n_out, 0:n_in].set(wi)
        b_slab = b_slab.at[0:n_out, i].set(bi)
    return w_slab, b_slab


# ---------------------------------------------------------------------------
# Wrapper
# ---------------------------------------------------------------------------
def meta_invariant_autoencoder(x, params, *, tile_b=512):
    """x: (N, 1) float32. params: 8 (w, b) pairs, w (out, in), b (out,).

    Returns (latent (N, 3), reconstructed (N, 1)) — same as the PyTorch module.
    """
    N, f_in = x.shape
    assert f_in == 1

    # Normalize the batch tile: multiple of 128 (lane width), no bigger than
    # the (128-rounded) batch so tiny inputs don't over-pad.
    n128 = pl.cdiv(N, 128) * 128
    tile_b = max(128, (min(tile_b, n128) // 128) * 128)

    w_slab, b_slab = _pack_params(params)

    # Batch onto the lane axis; pad batch to a multiple of tile_b.
    x_t = x.T                                                  # (1, N)
    n_pad = pl.cdiv(N, tile_b) * tile_b
    if n_pad != N:
        x_t = jnp.pad(x_t, ((0, 0), (0, n_pad - N)))

    grid = (n_pad // tile_b,)

    in_specs = [
        pl.BlockSpec((1, tile_b), lambda i: (0, i)),           # x (batch-tiled)
        pl.BlockSpec(w_slab.shape, lambda i: (0, 0)),          # resident weight slab
        pl.BlockSpec(b_slab.shape, lambda i: (0, 0)),          # resident bias slab
    ]
    # Single combined lane-dense output slab: rows 0..2 = latent, row 3 = recon.
    out_specs = pl.BlockSpec((4, tile_b), lambda i: (0, i))
    out_shape = jax.ShapeDtypeStruct((4, n_pad), jnp.float32)

    macs_per_sample = sum(fi * fo for fi, fo in _DIMS)         # 570
    cost = pl.CostEstimate(
        flops=2 * macs_per_sample * n_pad,
        transcendentals=0,
        bytes_accessed=(1 + 4) * 4 * n_pad + 4 * (w_slab.size + b_slab.size),
    )

    out = pl.pallas_call(
        _autoenc_kernel,
        out_shape=out_shape,
        grid_spec=pltpu.PrefetchScalarGridSpec(
            num_scalar_prefetch=0,
            grid=grid,
            in_specs=in_specs,
            out_specs=out_specs,
        ),
        compiler_params=pltpu.CompilerParams(
            dimension_semantics=("parallel",),
        ),
        cost_estimate=cost,
    )(x_t, w_slab, b_slab)

    # Back to the public (N, F) layout; drop batch padding.
    latent = out[0:3, :N].T                                    # (N, 3)
    recon = out[3:4, :N].T                                     # (N, 1)
    return latent, recon


# ---------------------------------------------------------------------------
# Deterministic parameter init (PyTorch-style uniform(-1/sqrt(fan_in), +...))
# ---------------------------------------------------------------------------
def init_params(key):
    params = []
    for fan_in, fan_out in _DIMS:
        key, kw, kb = jax.random.split(key, 3)
        bound = 1.0 / (fan_in ** 0.5)
        w = jax.random.uniform(kw, (fan_out, fan_in), jnp.float32, -bound, bound)
        b = jax.random.uniform(kb, (fan_out,), jnp.float32, -bound, bound)
        params.append((w, b))
    return params


def reference_forward(x, params):
    def lin(h, p):
        return h @ p[0].T + p[1]

    h = x
    for p in params[:3]:
        h = jnp.maximum(lin(h, p), 0.0)
    latent = lin(h, params[3])
    d = latent
    for p in params[4:7]:
        d = jnp.maximum(lin(d, p), 0.0)
    recon = lin(d, params[7])
    return latent, recon


if __name__ == "__main__":
    key = jax.random.PRNGKey(0)
    kx, kp = jax.random.split(key)

    # Each sample is a single scalar feature, as in the PyTorch module.
    # N is deliberately not a multiple of 128 to exercise the padding path.
    N = 1000
    x = jax.random.normal(kx, (N, 1), jnp.float32)
    params = init_params(kp)

    latent, recon = meta_invariant_autoencoder(x, params, tile_b=512)
    latent, recon = jax.block_until_ready((latent, recon))

    ref_latent, ref_recon = reference_forward(x, params)
    assert latent.shape == (N, 3) and recon.shape == (N, 1)
    assert jnp.allclose(latent, ref_latent, atol=1e-5, rtol=1e-5)
    assert jnp.allclose(recon, ref_recon, atol=1e-5, rtol=1e-5)

    print("KERNEL_OK")
</pallas_src>

<mosaic_0001>
module attributes {stable_mosaic.version = 11 : i64} {
  func.func @_autoenc_kernel(%arg0: i32, %arg1: memref<1x512xf32, #tpu.memory_space<vmem>>, %arg2: memref<192x32xf32, #tpu.memory_space<vmem>>, %arg3: memref<24x8xf32, #tpu.memory_space<vmem>>, %arg4: memref<4x512xf32, #tpu.memory_space<vmem>>) attributes {dimension_semantics = [#tpu.dimension_semantics<parallel>], iteration_bounds = array<i64: 2>, scalar_prefetch = 0 : i64, scratch_operands = 0 : i64, tpu.core_type = #tpu.core_type<tc>, window_params = [{transform_indices = @transform_0, window_bounds = array<i64: 1, 512>}, {pipeline_mode = #tpu.pipeline_mode<synchronous>, transform_indices = @transform_1, window_bounds = array<i64: 192, 32>}, {pipeline_mode = #tpu.pipeline_mode<synchronous>, transform_indices = @transform_2, window_bounds = array<i64: 24, 8>}, {transform_indices = @transform_3, window_bounds = array<i64: 4, 512>}]} {
    %c0 = arith.constant 0 : index
    %c0_0 = arith.constant 0 : index
    %0 = vector.load %arg1[%c0, %c0_0] : memref<1x512xf32, #tpu.memory_space<vmem>>, vector<1x512xf32>
    %c0_1 = arith.constant 0 : index
    %c0_2 = arith.constant 0 : index
    %1 = vector.load %arg2[%c0_1, %c0_2] : memref<192x32xf32, #tpu.memory_space<vmem>>, vector<20x1xf32>
    %2 = vector.broadcast %1 : vector<20x1xf32> to vector<20x512xf32>
    %3 = vector.broadcast %0 : vector<1x512xf32> to vector<20x512xf32>
    %4 = arith.mulf %2, %3 : vector<20x512xf32>
    %c0_3 = arith.constant 0 : index
    %c0_4 = arith.constant 0 : index
    %5 = vector.load %arg3[%c0_3, %c0_4] : memref<24x8xf32, #tpu.memory_space<vmem>>, vector<20x1xf32>
    %6 = vector.broadcast %5 : vector<20x1xf32> to vector<20x512xf32>
    %7 = arith.addf %4, %6 : vector<20x512xf32>
    %cst = arith.constant 0.000000e+00 : f32
    %8 = vector.broadcast %cst : f32 to vector<20x512xf32>
    %9 = arith.maximumf %7, %8 : vector<20x512xf32>
    %c24 = arith.constant 24 : index
    %c0_5 = arith.constant 0 : index
    %10 = vector.load %arg2[%c24, %c0_5] : memref<192x32xf32, #tpu.memory_space<vmem>>, vector<10x20xf32>
    %cst_6 = arith.constant dense<0.000000e+00> : vector<10x512xf32>
    %11 = tpu.matmul %10, %9, %cst_6 {dimension_numbers = #tpu.dot_dimension_numbers<[1], [0], [0], [1], [0, 0, 1, 1], [], []>} : vector<10x20xf32>, vector<20x512xf32>, vector<10x512xf32> -> vector<10x512xf32>
    %c0_7 = arith.constant 0 : index
    %c1 = arith.constant 1 : index
    %12 = vector.load %arg3[%c0_7, %c1] : memref<24x8xf32, #tpu.memory_space<vmem>>, vector<10x1xf32>
    %13 = vector.broadcast %12 : vector<10x1xf32> to vector<10x512xf32>
    %14 = arith.addf %11, %13 : vector<10x512xf32>
    %cst_8 = arith.constant 0.000000e+00 : f32
    %15 = vector.broadcast %cst_8 : f32 to vector<10x512xf32>
    %16 = arith.maximumf %14, %15 : vector<10x512xf32>
    %c48 = arith.constant 48 : index
    %c0_9 = arith.constant 0 : index
    %17 = vector.load %arg2[%c48, %c0_9] : memref<192x32xf32, #tpu.memory_space<vmem>>, vector<5x10xf32>
    %cst_10 = arith.constant dense<0.000000e+00> : vector<5x512xf32>
    %18 = tpu.matmul %17, %16, %cst_10 {dimension_numbers = #tpu.dot_dimension_numbers<[1], [0], [0], [1], [0, 0, 1, 1], [], []>} : vector<5x10xf32>, vector<10x512xf32>, vector<5x512xf32> -> vector<5x512xf32>
    %c0_11 = arith.constant 0 : index
    %c2 = arith.constant 2 : index
    %19 = vector.load %arg3[%c0_11, %c2] : memref<24x8xf32, #tpu.memory_space<vmem>>, vector<5x1xf32>
    %20 = vector.broadcast %19 : vector<5x1xf32> to vector<5x512xf32>
    %21 = arith.addf %18, %20 : vector<5x512xf32>
    %cst_12 = arith.constant 0.000000e+00 : f32
    %22 = vector.broadcast %cst_12 : f32 to vector<5x512xf32>
    %23 = arith.maximumf %21, %22 : vector<5x512xf32>
    %c72 = arith.constant 72 : index
    %c0_13 = arith.constant 0 : index
    %24 = vector.load %arg2[%c72, %c0_13] : memref<192x32xf32, #tpu.memory_space<vmem>>, vector<3x5xf32>
    %cst_14 = arith.constant dense<0.000000e+00> : vector<3x512xf32>
    %25 = tpu.matmul %24, %23, %cst_14 {dimension_numbers = #tpu.dot_dimension_numbers<[1], [0], [0], [1], [0, 0, 1, 1], [], []>} : vector<3x5xf32>, vector<5x512xf32>, vector<3x512xf32> -> vector<3x512xf32>
    %c0_15 = arith.constant 0 : index
    %c3 = arith.constant 3 : index
    %26 = vector.load %arg3[%c0_15, %c3] : memref<24x8xf32, #tpu.memory_space<vmem>>, vector<3x1xf32>
    %27 = vector.broadcast %26 : vector<3x1xf32> to vector<3x512xf32>
    %28 = arith.addf %25, %27 : vector<3x512xf32>
    %c0_16 = arith.constant 0 : index
    %c0_17 = arith.constant 0 : index
    %29 = vector.load %arg4[%c0_16, %c0_17] : memref<4x512xf32, #tpu.memory_space<vmem>>, vector<3x512xf32>
    tpu.vector_store %arg4[%c0_16, %c0_17], %28 {strides = array<i32>} : memref<4x512xf32, #tpu.memory_space<vmem>>, vector<3x512xf32>,
    %c96 = arith.constant 96 : index
    %c0_18 = arith.constant 0 : index
    %30 = vector.load %arg2[%c96, %c0_18] : memref<192x32xf32, #tpu.memory_space<vmem>>, vector<5x3xf32>
    %cst_19 = arith.constant dense<0.000000e+00> : vector<5x512xf32>
    %31 = tpu.matmul %30, %28, %cst_19 {dimension_numbers = #tpu.dot_dimension_numbers<[1], [0], [0], [1], [0, 0, 1, 1], [], []>} : vector<5x3xf32>, vector<3x512xf32>, vector<5x512xf32> -> vector<5x512xf32>
    %c0_20 = arith.constant 0 : index
    %c4 = arith.constant 4 : index
    %32 = vector.load %arg3[%c0_20, %c4] : memref<24x8xf32, #tpu.memory_space<vmem>>, vector<5x1xf32>
    %33 = vector.broadcast %32 : vector<5x1xf32> to vector<5x512xf32>
    %34 = arith.addf %31, %33 : vector<5x512xf32>
    %cst_21 = arith.constant 0.000000e+00 : f32
    %35 = vector.broadcast %cst_21 : f32 to vector<5x512xf32>
    %36 = arith.maximumf %34, %35 : vector<5x512xf32>
    %c120 = arith.constant 120 : index
    %c0_22 = arith.constant 0 : index
    %37 = vector.load %arg2[%c120, %c0_22] : memref<192x32xf32, #tpu.memory_space<vmem>>, vector<10x5xf32>
    %cst_23 = arith.constant dense<0.000000e+00> : vector<10x512xf32>
    %38 = tpu.matmul %37, %36, %cst_23 {dimension_numbers = #tpu.dot_dimension_numbers<[1], [0], [0], [1], [0, 0, 1, 1], [], []>} : vector<10x5xf32>, vector<5x512xf32>, vector<10x512xf32> -> vector<10x512xf32>
    %c0_24 = arith.constant 0 : index
    %c5 = arith.constant 5 : index
    %39 = vector.load %arg3[%c0_24, %c5] : memref<24x8xf32, #tpu.memory_space<vmem>>, vector<10x1xf32>
    %40 = vector.broadcast %39 : vector<10x1xf32> to vector<10x512xf32>
    %41 = arith.addf %38, %40 : vector<10x512xf32>
    %cst_25 = arith.constant 0.000000e+00 : f32
    %42 = vector.broadcast %cst_25 : f32 to vector<10x512xf32>
    %43 = arith.maximumf %41, %42 : vector<10x512xf32>
    %c144 = arith.constant 144 : index
    %c0_26 = arith.constant 0 : index
    %44 = vector.load %arg2[%c144, %c0_26] : memref<192x32xf32, #tpu.memory_space<vmem>>, vector<20x10xf32>
    %cst_27 = arith.constant dense<0.000000e+00> : vector<20x512xf32>
    %45 = tpu.matmul %44, %43, %cst_27 {dimension_numbers = #tpu.dot_dimension_numbers<[1], [0], [0], [1], [0, 0, 1, 1], [], []>} : vector<20x10xf32>, vector<10x512xf32>, vector<20x512xf32> -> vector<20x512xf32>
    %c0_28 = arith.constant 0 : index
    %c6 = arith.constant 6 : index
    %46 = vector.load %arg3[%c0_28, %c6] : memref<24x8xf32, #tpu.memory_space<vmem>>, vector<20x1xf32>
    %47 = vector.broadcast %46 : vector<20x1xf32> to vector<20x512xf32>
    %48 = arith.addf %45, %47 : vector<20x512xf32>
    %cst_29 = arith.constant 0.000000e+00 : f32
    %49 = vector.broadcast %cst_29 : f32 to vector<20x512xf32>
    %50 = arith.maximumf %48, %49 : vector<20x512xf32>
    %c168 = arith.constant 168 : index
    %c0_30 = arith.constant 0 : index
    %51 = vector.load %arg2[%c168, %c0_30] : memref<192x32xf32, #tpu.memory_space<vmem>>, vector<20x1xf32>
    %52 = vector.broadcast %51 : vector<20x1xf32> to vector<20x512xf32>
    %53 = arith.mulf %52, %50 : vector<20x512xf32>
    %cst_31 = arith.constant dense<0.000000e+00> : vector<512xf32>
    %54 = vector.multi_reduction <add>, %53, %cst_31 [0] : vector<20x512xf32> to vector<512xf32>
    %55 = vector.shape_cast %54 : vector<512xf32> to vector<1x512xf32>
    %c0_32 = arith.constant 0 : index
    %c7 = arith.constant 7 : index
    %56 = vector.load %arg3[%c0_32, %c7] : memref<24x8xf32, #tpu.memory_space<vmem>>, vector<1x1xf32>
    %57 = vector.broadcast %56 : vector<1x1xf32> to vector<1x512xf32>
    %58 = arith.addf %55, %57 : vector<1x512xf32>
    %c3_33 = arith.constant 3 : index
    %c0_34 = arith.constant 0 : index
    %59 = vector.load %arg4[%c3_33, %c0_34] : memref<4x512xf32, #tpu.memory_space<vmem>>, vector<1x512xf32>
    tpu.vector_store %arg4[%c3_33, %c0_34], %58 {strides = array<i32>} : memref<4x512xf32, #tpu.memory_space<vmem>>, vector<1x512xf32>,
    return
  }
  func.func @transform_0(%arg0: i32) -> (i32, i32) {
    %c0_i32 = arith.constant 0 : i32
    %c0_i32_0 = arith.constant 0 : i32
    return %c0_i32, %arg0 : i32, i32
  }
  func.func @transform_1(%arg0: i32) -> (i32, i32) {
    %c0_i32 = arith.constant 0 : i32
    %c0_i32_0 = arith.constant 0 : i32
    %c0_i32_1 = arith.constant 0 : i32
    return %c0_i32, %c0_i32_0 : i32, i32
  }
  func.func @transform_2(%arg0: i32) -> (i32, i32) {
    %c0_i32 = arith.constant 0 : i32
    %c0_i32_0 = arith.constant 0 : i32
    %c0_i32_1 = arith.constant 0 : i32
    return %c0_i32, %c0_i32_0 : i32, i32
  }
  func.func @transform_3(%arg0: i32) -> (i32, i32) {
    %c0_i32 = arith.constant 0 : i32
    %c0_i32_0 = arith.constant 0 : i32
    return %c0_i32, %arg0 : i32, i32
  }
}

</mosaic_0001>

<llo_original>
// kernel: tpu_custom_call.1
$region0: #{tpu_custom_call.1}
  #allocation0 [shape = 'u32[]', space=smem, size = 0x4, offset = 0x4, fixed_abs, tag = 'smem constant byte address 0x4 - core index']
  #allocation1 [shape = 'u32[144,128]{1,0:T(1,128)}', space=vmem, size = 0x12000, scoped, tag = 'internal scratch']
  %s0 = inlined_call_operand.vmem [shape: f32[1,1024], index: 0, kind: input, shape index: {}]
  %s1 = inlined_call_operand.vmem [shape: f32[192,32], index: 1, kind: input, shape index: {}]
  %s2 = inlined_call_operand.vmem [shape: f32[24,8], index: 2, kind: input, shape index: {}]
  %s3 = inlined_call_operand.hbm [shape: f32[4,1024], index: 3, kind: output, shape index: {}]
  %s4 = sld [smem:[#allocation0]]
  $region45: #{tpu_custom_call.1} parent=0
    _
  %s6 = ssub.s32 1, %s4
  %s7 = scalar_select 0, %s6, %s4
  $region1: #{tpu_custom_call.1} parent=0
    #allocation2 [shape = 'u8[16384]{0}', space=vmem, size = 0x4000, scoped, tag = 'output window, operand 0']
    #allocation3 [shape = 's32[2]{0}', space=sflag, size = 0x8, scoped, tag = 'scoped memory for tpu_custom_call.1']
    %8 = vsyncpa [#allocation3], 0
    %s9 = scalar_lea.sflag [#allocation3], 1
    %10 = vsyncpa %s9, 0
    loop: start=0, step=1, limit=4
    $region2: #{tpu_custom_call.1} parent=1 // loop_pre_header
      _
    $region3: #{tpu_custom_call.1} parent=1 // loop_header
      %s12 = sphi 0, %s16
      %p13 = scmp.ge.s32.totalorder %s12, 4
      %s22 = sphi 0, %s24
      %s25 = sphi 0, %s22
      %s26 = sphi 0, %s25
      %s42 = sphi 0, %s26
      %s46 = sphi 0, %s46
      %s48 = sphi 0, %s46
      %s49 = sphi 0, %s48
      %s63 = sphi 0, %s49
      %s67 = sphi 0, %s67
      %s69 = sphi 0, %s67
      %s70 = sphi 0, %s69
      %s84 = sphi 0, %s70
      %s90 = sphi 0, %s92
      %s93 = sphi 0, %s90
      %s94 = sphi 0, %s93
      %s110 = sphi 0, %s94
    $region4: #{tpu_custom_call.1} parent=1 // loop_header_branch
      %15 = sbr.rel (%p13) target = $region8
    $region5: #{tpu_custom_call.1} parent=1 // loop_body
      %s17 = ssub.s32 %s12, 1
      %s18 = ssub.s32 %s12, 2
      %s19 = sadd.s32 %s12, 1
      %s20 = ssub.s32 %s12, %s19
      %p21 = scmp.eq.s32.totalorder %s20, 0
      %s23 = sadd.s32 %s22, 1
      %s24 = scalar_select %p21, %s22, %s23
      %p27 = pneg %p21
      %p28 = scmp.eq.s32.totalorder %s12, 1
      %p29 = por %p27, %p28
      %p30 = scmp.ne.s32.totalorder %s22, %s25
      %p31 = scmp.eq.s32.totalorder %s12, 0
      %p32 = por %p30, %p31
      %p33 = scmp.ne.s32.totalorder %s22, %s25
      %p34 = scmp.eq.s32.totalorder %s17, 1
      %p35 = por %p33, %p34
      %p36 = scmp.ne.s32.totalorder %s25, %s26
      %p37 = scmp.eq.s32.totalorder %s17, 0
      %p38 = por %p36, %p37
      %p39 = scmp.ne.s32.totalorder %s25, %s26
      %p40 = scmp.eq.s32.totalorder %s18, 1
      %p41 = por %p39, %p40
      %p43 = scmp.ne.s32.totalorder %s26, %s42
      %p44 = scmp.eq.s32.totalorder %s18, 0
      %p45 = por %p43, %p44
      %s47 = sadd.s32 %s46, 1
      %p50 = scmp.eq.s32.totalorder %s12, 1
      %p51 = scmp.ne.s32.totalorder %s46, %s48
      %p52 = scmp.eq.s32.totalorder %s12, 0
      %p53 = por %p51, %p52
      %p54 = scmp.ne.s32.totalorder %s46, %s48
      %p55 = scmp.eq.s32.totalorder %s17, 1
      %p56 = por %p54, %p55
      %p57 = scmp.ne.s32.totalorder %s48, %s49
      %p58 = scmp.eq.s32.totalorder %s17, 0
      %p59 = por %p57, %p58
      %p60 = scmp.ne.s32.totalorder %s48, %s49
      %p61 = scmp.eq.s32.totalorder %s18, 1
      %p62 = por %p60, %p61
      %p64 = scmp.ne.s32.totalorder %s49, %s63
      %p65 = scmp.eq.s32.totalorder %s18, 0
      %p66 = por %p64, %p65
      %s68 = sadd.s32 %s67, 1
      %p71 = scmp.eq.s32.totalorder %s12, 1
      %p72 = scmp.ne.s32.totalorder %s67, %s69
      %p73 = scmp.eq.s32.totalorder %s12, 0
      %p74 = por %p72, %p73
      %p75 = scmp.ne.s32.totalorder %s67, %s69
      %p76 = scmp.eq.s32.totalorder %s17, 1
      %p77 = por %p75, %p76
      %p78 = scmp.ne.s32.totalorder %s69, %s70
      %p79 = scmp.eq.s32.totalorder %s17, 0
      %p80 = por %p78, %p79
      %p81 = scmp.ne.s32.totalorder %s69, %s70
      %p82 = scmp.eq.s32.totalorder %s18, 1
      %p83 = por %p81, %p82
      %p85 = scmp.ne.s32.totalorder %s70, %s84
      %p86 = scmp.eq.s32.totalorder %s18, 0
      %p87 = por %p85, %p86
      %s88 = ssub.s32 %s12, %s19
      %p89 = scmp.eq.s32.totalorder %s88, 0
      %s91 = sadd.s32 %s90, 1
      %s92 = scalar_select %p89, %s90, %s91
      %p95 = pneg %p89
      %p96 = scmp.eq.s32.totalorder %s12, 1
      %p97 = por %p95, %p96
      %p98 = scmp.ne.s32.totalorder %s90, %s93
      %p99 = scmp.eq.s32.totalorder %s12, 0
      %p100 = por %p98, %p99
      %p101 = scmp.ne.s32.totalorder %s90, %s93
      %p102 = scmp.eq.s32.totalorder %s17, 1
      %p103 = por %p101, %p102
      %p104 = scmp.ne.s32.totalorder %s93, %s94
      %p105 = scmp.eq.s32.totalorder %s17, 0
      %p106 = por %p104, %p105
      %p107 = scmp.ne.s32.totalorder %s93, %s94
      %p108 = scmp.eq.s32.totalorder %s18, 1
      %p109 = por %p107, %p108
      %p111 = scmp.ne.s32.totalorder %s94, %s110
      %p112 = scmp.eq.s32.totalorder %s18, 0
      %p113 = por %p111, %p112
      %p114 = scmp.le.s32.totalorder 1, %s12
      %p115 = scmp.lt.s32.totalorder %s12, 3
      %p116 = pnand %p114, %p115
      %p117 = pneg %p116
      // Predicated region
      $region9: #{tpu_custom_call.1} parent=5 // pred_check
        _
      $region10: #{tpu_custom_call.1} parent=5 // pred_check_branch
        %119 = sbr.rel (%p116) target = $region12
      $region11: #{tpu_custom_call.1} parent=5 // pred_region
        %s120 = ssub.s32 %s12, 1
        // Predicated region
        $region13: #{tpu_custom_call.1} parent=11 // pred_check
          %p121 = pneg %p59
        $region14: #{tpu_custom_call.1} parent=11 // pred_check_branch
          %123 = sbr.rel (%p121) target = $region16
        $region15: #{tpu_custom_call.1} parent=11 // pred_region
          _
        $region16: #{tpu_custom_call.1} parent=11 // pred_fallthru
          _
        // Predicated region
        $region17: #{tpu_custom_call.1} parent=11 // pred_check
          %p124 = pneg %p80
        $region18: #{tpu_custom_call.1} parent=11 // pred_check_branch
          %126 = sbr.rel (%p124) target = $region20
        $region19: #{tpu_custom_call.1} parent=11 // pred_region
          _
        $region20: #{tpu_custom_call.1} parent=11 // pred_fallthru
          _
      $region12: #{tpu_custom_call.1} parent=5 // pred_fallthru
        _
      %p127 = scmp.lt.s32.totalorder %s12, 2
      // Predicated region
      $region21: #{tpu_custom_call.1} parent=5 // pred_check
        %p128 = pneg %p127
      $region22: #{tpu_custom_call.1} parent=5 // pred_check_branch
        %130 = sbr.rel (%p128) target = $region24
      $region23: #{tpu_custom_call.1} parent=5 // pred_region
        // Predicated region
        $region25: #{tpu_custom_call.1} parent=23 // pred_check
          %p131 = pneg %p32
        $region26: #{tpu_custom_call.1} parent=23 // pred_check_branch
          %133 = sbr.rel (%p131) target = $region28
        $region27: #{tpu_custom_call.1} parent=23 // pred_region
          %s134 = smul.u32 4, %s12
          %p135 = scmp.lt.s32.totalorder %s134, 7
          %s136 = scalar_select %p135, %s134, 7
          %s137 = scalar_lea.vmem %s0, %s136
          %s138 = smul.u32 4, %s12
        $region28: #{tpu_custom_call.1} parent=23 // pred_fallthru
          _
      $region24: #{tpu_custom_call.1} parent=5 // pred_fallthru
        _
      %p139 = scmp.le.s32.totalorder 1, %s12
      %p140 = scmp.lt.s32.totalorder %s12, 3
      %p141 = pnand %p139, %p140
      %p142 = pneg %p141
      // Predicated region
      $region29: #{tpu_custom_call.1} parent=5 // pred_check
        _
      $region30: #{tpu_custom_call.1} parent=5 // pred_check_branch
        %144 = sbr.rel (%p141) target = $region32
      $region31: #{tpu_custom_call.1} parent=5 // pred_region
        %s145 = ssub.s32 %s12, 1
        %s146 = smul.u32 4, %s17
        %p147 = scmp.lt.s32.totalorder %s146, 7
        %s148 = scalar_select %p147, %s146, 7
        %s149 = scalar_lea.vmem %s0, %s148
        %p150 = pneg %p38
        %p151 = pneg %p35
        %p152 = pneg %p59
        %p153 = pneg %p56
        %p154 = pneg %p80
        %p155 = pneg %p77
        %p156 = pneg %p106
        %p157 = pneg %p103
        %s158 = sand.u32 %s93, 1
        %s159 = scalar_lea.sflag [#allocation3], %s158
        %s160 = sand.u32 %s93, 1
        %s161 = smul.addr %s160, 16
        %s162 = scalar_lea.vmem [#allocation2], %s161
        %s163 = smul.u32 4, %s17
        %p164 = scmp.lt.s32.totalorder %s163, 7
        %s165 = scalar_select %p164, %s163, 7
        %s166 = scalar_lea.vmem %s0, %s165
        %s167 = smul.u32 4, %s17
        %s168 = smul.u32 4, %s17
        %v169 = vld [vmem:[%s166] sm:$0xf]
        %v170 = vld [vmem:[%s1] sm:$0xff]
        %v171 = vld [vmem:[%s1 + $0x8] sm:$0xff]
        %v172 = vld [vmem:[%s1 + $0x10] sm:$0xf]
        %174 = vset.pattern.permute.xlu0 0
        %175 = vperm.xlu0 %174, %v170
        %v176 = vpop.permute.xlu0 %175
        %179 = vset.pattern.permute.xlu0 0
        %180 = vperm.xlu0 %179, %v171
        %v181 = vpop.permute.xlu0 %180
        %184 = vset.pattern.permute.xlu0 0
        %185 = vperm.xlu0 %184, %v172
        %v186 = vpop.permute.xlu0 %185
        %v189 = vlaneseq
        %v190 = vshrl.u32 %v189, 7
        %v191 = vsub.s32 0, %v190
        %v192 = vrot.slane %v169, %v191
        %v193 = vlaneseq
        %v194 = vshrl.u32 %v193, 7
        %v195 = vsub.s32 1, %v194
        %v196 = vrot.slane %v169, %v195
        %v197 = vlaneseq
        %v198 = vshrl.u32 %v197, 7
        %v199 = vsub.s32 2, %v198
        %v200 = vrot.slane %v169, %v199
        %v201 = vlaneseq
        %v202 = vshrl.u32 %v201, 7
        %v203 = vsub.s32 3, %v202
        %v204 = vrot.slane %v169, %v203
        %v209 = vmul.f32 %v176, %v192
        %v210 = vmul.f32 %v176, %v196
        %v211 = vmul.f32 %v176, %v200
        %v212 = vmul.f32 %v176, %v204
        %v213 = vmul.f32 %v181, %v192
        %v214 = vmul.f32 %v181, %v196
        %v215 = vmul.f32 %v181, %v200
        %v216 = vmul.f32 %v181, %v204
        %v217 = vmul.f32 %v186, %v192
        %v218 = vmul.f32 %v186, %v196
        %v219 = vmul.f32 %v186, %v200
        %v220 = vmul.f32 %v186, %v204
        %v221 = vld [vmem:[%s2] sm:$0xff]
        %v222 = vld [vmem:[%s2 + $0x8] sm:$0xff]
        %v223 = vld [vmem:[%s2 + $0x10] sm:$0xf]
        %225 = vset.pattern.permute.xlu0 0
        %226 = vperm.xlu0 %225, %v221
        %v227 = vpop.permute.xlu0 %226
        %230 = vset.pattern.permute.xlu0 0
        %231 = vperm.xlu0 %230, %v222
        %v232 = vpop.permute.xlu0 %231
        %235 = vset.pattern.permute.xlu0 0
        %236 = vperm.xlu0 %235, %v223
        %v237 = vpop.permute.xlu0 %236
        %v239 = vadd.f32 %v209, %v227
        %v240 = vadd.f32 %v210, %v227
        %v241 = vadd.f32 %v211, %v227
        %v242 = vadd.f32 %v212, %v227
        %v243 = vadd.f32 %v213, %v232
        %v244 = vadd.f32 %v214, %v232
        %v245 = vadd.f32 %v215, %v232
        %v246 = vadd.f32 %v216, %v232
        %v247 = vadd.f32 %v217, %v237
        %v248 = vadd.f32 %v218, %v237
        %v249 = vadd.f32 %v219, %v237
        %v250 = vadd.f32 %v220, %v237
        %v251 = vmax.f32 %v239, 0.0
        %v252 = vmax.f32 %v240, 0.0
        %v253 = vmax.f32 %v241, 0.0
        %v254 = vmax.f32 %v242, 0.0
        %v255 = vmax.f32 %v243, 0.0
        %v256 = vmax.f32 %v244, 0.0
        %v257 = vmax.f32 %v245, 0.0
        %v258 = vmax.f32 %v246, 0.0
        %v259 = vmax.f32 %v247, 0.0
        %v260 = vmax.f32 %v248, 0.0
        %v261 = vmax.f32 %v249, 0.0
        %v262 = vmax.f32 %v250, 0.0
        %v263 = vld [vmem:[%s1 + $0x18] sm:$0xff]
        %v264 = vld [vmem:[%s1 + $0x20] sm:$0x3]
        %v265 = vld [vmem:[%s2] sm:$0xff]
        %v266 = vld [vmem:[%s2 + $0x8] sm:$0x3]
        %268 = vset.pattern.permute.xlu0 1
        %269 = vperm.xlu0 %268, %v265
        %v270 = vpop.permute.xlu0 %269
        %273 = vset.pattern.permute.xlu0 1
        %274 = vperm.xlu0 %273, %v266
        %v275 = vpop.permute.xlu0 %274
        %vm277 = vcmask 162816
        %v279 = vsel %vm277, %v263, 0
        %v282 = vsel %vm277, %v264, 0
        %vm284 = vcmask 1043456
        %v286 = vsel %vm284, %v259, 0
        %v289 = vsel %vm284, %v260, 0
        %v292 = vsel %vm284, %v261, 0
        %v295 = vsel %vm284, %v262, 0
        %297 = vmatprep.subr.mxu0 0.0
        %298 = vmatpush1.msra.mxu0 0.0
        %299 = vmatprep.subr.mxu0 0.0
        %300 = vmatpush1.msra.mxu0 0.0
        %301 = vmatprep.subr.mxu0 0.0
        %302 = vmatpush1.msra.mxu0 0.0
        %303 = vmatprep.subr.mxu0 0.0
        %304 = vmatpush1.msra.mxu0 0.0
        %305 = vmatprep.subr.mxu0 0.0
        %306 = vmatpush1.msra.mxu0 0.0
        %307 = vmatprep.subr.mxu0 0.0
        %308 = vmatpush1.msra.mxu0 0.0
        %309 = vmatprep.subr.mxu0 0.0
        %310 = vmatpush1.msra.mxu0 0.0
        %311 = vmatprep.subr.mxu0 0.0
        %312 = vmatpush1.msra.mxu0 0.0
        %313 = vmatprep.subr.mxu0 0.0
        %314 = vmatpush1.msra.mxu0 0.0
        %315 = vmatprep.subr.mxu0 0.0
        %316 = vmatpush1.msra.mxu0 0.0
        %317 = vmatprep.subr.mxu0 0.0
        %318 = vmatpush1.msra.mxu0 0.0
        %319 = vmatprep.subr.mxu0 0.0
        %320 = vmatpush1.msra.mxu0 0.0
        %321 = vmatprep.subr.mxu0 0.0
        %322 = vmatpush1.msra.mxu0 0.0
        %323 = vmatprep.subr.mxu0 %v289
        %324 = vmatpush1.msra.mxu0 %v286
        %325 = vmatprep.subr.mxu0 %v256
        %326 = vmatpush1.msra.mxu0 %v255
        %327 = vmatprep.subr.mxu0 %v252
        %328 = vmatpush1.msra.mxu0 %v251
        %329 = vmatprep.subr.mxu0 0.0
        %330 = vmatpush2.msra.mxu0 0.0
        %331 = vmatprep.subr.mxu0 0.0
        %332 = vmatpush2.msra.mxu0 0.0
        %333 = vmatprep.subr.mxu0 0.0
        %334 = vmatpush2.msra.mxu0 0.0
        %335 = vmatprep.subr.mxu0 0.0
        %336 = vmatpush2.msra.mxu0 0.0
        %337 = vmatprep.subr.mxu0 0.0
        %338 = vmatpush2.msra.mxu0 0.0
        %339 = vmatprep.subr.mxu0 0.0
        %340 = vmatpush2.msra.mxu0 0.0
        %341 = vmatprep.subr.mxu0 0.0
        %342 = vmatpush2.msra.mxu0 0.0
        %343 = vmatprep.subr.mxu0 0.0
        %344 = vmatpush2.msra.mxu0 0.0
        %345 = vmatprep.subr.mxu0 0.0
        %346 = vmatpush2.msra.mxu0 0.0
        %347 = vmatprep.subr.mxu0 0.0
        %348 = vmatpush2.msra.mxu0 0.0
        %349 = vmatprep.subr.mxu0 0.0
        %350 = vmatpush2.msra.mxu0 0.0
        %351 = vmatprep.subr.mxu0 0.0
        %352 = vmatpush2.msra.mxu0 0.0
        %353 = vmatprep.subr.mxu0 0.0
        %354 = vmatpush2.msra.mxu0 0.0
        %355 = vmatprep.subr.mxu0 0.0
        %356 = vmatpush2.msra.mxu0 0.0
        %357 = vmatprep.subr.mxu0 0.0
        %358 = vmatpush2.msra.mxu0 0.0
        %359 = vmatprep.subr.mxu0 0.0
        %360 = vmatpush2.msra.mxu0 0.0
        %361 = vmatprep.mubr.f32.mxu0 0.0
        %362 = vmatmul.mubr.f32.gmra.mxu0 %v279
        %v363 = vpop.f32.mrf.mxu0
        %v364 = vadd.f32 %v270, %v363
        %v365 = vpop.f32.mrf.mxu0
        %v366 = vadd.f32 %v270, %v365
        %367 = vmatprep.mubr.f32.mxu0 0.0
        %368 = vmatmul.mubr.f32.gmra.mxu0 %v282
        %v369 = vpop.f32.mrf.mxu0
        %v370 = vadd.f32 %v275, %v369
        %v371 = vpop.f32.mrf.mxu0
        %v372 = vadd.f32 %v275, %v371
        %373 = vdwg.mxu0
        %374 = vmatprep.subr.mxu0 0.0
        %375 = vmatpush1.msra.mxu0 0.0
        %376 = vmatprep.subr.mxu0 0.0
        %377 = vmatpush1.msra.mxu0 0.0
        %378 = vmatprep.subr.mxu0 0.0
        %379 = vmatpush1.msra.mxu0 0.0
        %380 = vmatprep.subr.mxu0 0.0
        %381 = vmatpush1.msra.mxu0 0.0
        %382 = vmatprep.subr.mxu0 0.0
        %383 = vmatpush1.msra.mxu0 0.0
        %384 = vmatprep.subr.mxu0 0.0
        %385 = vmatpush1.msra.mxu0 0.0
        %386 = vmatprep.subr.mxu0 0.0
        %387 = vmatpush1.msra.mxu0 0.0
        %388 = vmatprep.subr.mxu0 0.0
        %389 = vmatpush1.msra.mxu0 0.0
        %390 = vmatprep.subr.mxu0 0.0
        %391 = vmatpush1.msra.mxu0 0.0
        %392 = vmatprep.subr.mxu0 0.0
        %393 = vmatpush1.msra.mxu0 0.0
        %394 = vmatprep.subr.mxu0 0.0
        %395 = vmatpush1.msra.mxu0 0.0
        %396 = vmatprep.subr.mxu0 0.0
        %397 = vmatpush1.msra.mxu0 0.0
        %398 = vmatprep.subr.mxu0 0.0
        %399 = vmatpush1.msra.mxu0 0.0
        %400 = vmatprep.subr.mxu0 %v295
        %401 = vmatpush1.msra.mxu0 %v292
        %402 = vmatprep.subr.mxu0 %v258
        %403 = vmatpush1.msra.mxu0 %v257
        %404 = vmatprep.subr.mxu0 %v254
        %405 = vmatpush1.msra.mxu0 %v253
        %406 = vmatprep.subr.mxu0 0.0
        %407 = vmatpush2.msra.mxu0 0.0
        %408 = vmatprep.subr.mxu0 0.0
        %409 = vmatpush2.msra.mxu0 0.0
        %410 = vmatprep.subr.mxu0 0.0
        %411 = vmatpush2.msra.mxu0 0.0
        %412 = vmatprep.subr.mxu0 0.0
        %413 = vmatpush2.msra.mxu0 0.0
        %414 = vmatprep.subr.mxu0 0.0
        %415 = vmatpush2.msra.mxu0 0.0
        %416 = vmatprep.subr.mxu0 0.0
        %417 = vmatpush2.msra.mxu0 0.0
        %418 = vmatprep.subr.mxu0 0.0
        %419 = vmatpush2.msra.mxu0 0.0
        %420 = vmatprep.subr.mxu0 0.0
        %421 = vmatpush2.msra.mxu0 0.0
        %422 = vmatprep.subr.mxu0 0.0
        %423 = vmatpush2.msra.mxu0 0.0
        %424 = vmatprep.subr.mxu0 0.0
        %425 = vmatpush2.msra.mxu0 0.0
        %426 = vmatprep.subr.mxu0 0.0
        %427 = vmatpush2.msra.mxu0 0.0
        %428 = vmatprep.subr.mxu0 0.0
        %429 = vmatpush2.msra.mxu0 0.0
        %430 = vmatprep.subr.mxu0 0.0
        %431 = vmatpush2.msra.mxu0 0.0
        %432 = vmatprep.subr.mxu0 0.0
        %433 = vmatpush2.msra.mxu0 0.0
        %434 = vmatprep.subr.mxu0 0.0
        %435 = vmatpush2.msra.mxu0 0.0
        %436 = vmatprep.subr.mxu0 0.0
        %437 = vmatpush2.msra.mxu0 0.0
        %438 = vmatprep.mubr.f32.mxu0 0.0
        %439 = vmatmul.mubr.f32.gmra.mxu0 %v279
        %v440 = vpop.f32.mrf.mxu0
        %v441 = vadd.f32 %v270, %v440
        %v442 = vpop.f32.mrf.mxu0
        %v443 = vadd.f32 %v270, %v442
        %444 = vmatprep.mubr.f32.mxu0 0.0
        %445 = vmatmul.mubr.f32.gmra.mxu0 %v282
        %v446 = vpop.f32.mrf.mxu0
        %v447 = vadd.f32 %v275, %v446
        %v448 = vpop.f32.mrf.mxu0
        %v449 = vadd.f32 %v275, %v448
        %450 = vdwg.mxu0
        %v451 = vmax.f32 %v364, 0.0
        %v452 = vmax.f32 %v366, 0.0
        %v453 = vmax.f32 %v441, 0.0
        %v454 = vmax.f32 %v443, 0.0
        %v455 = vmax.f32 %v370, 0.0
        %v456 = vmax.f32 %v372, 0.0
        %v457 = vmax.f32 %v447, 0.0
        %v458 = vmax.f32 %v449, 0.0
        %v459 = vld [vmem:[%s1 + $0x30] sm:$0x1f]
        %v460 = vld [vmem:[%s2] sm:$0x1f]
        %462 = vset.pattern.permute.xlu0 2
        %463 = vperm.xlu0 %462, %v460
        %v464 = vpop.permute.xlu0 %463
        %vm466 = vcmask 80896
        %v468 = vsel %vm466, %v459, 0
        %vm470 = vcmask 1041408
        %v472 = vsel %vm470, %v455, 0
        %v475 = vsel %vm470, %v456, 0
        %v478 = vsel %vm470, %v457, 0
        %v481 = vsel %vm470, %v458, 0
        %483 = vmatprep.subr.mxu0 0.0
        %484 = vmatpush1.msra.mxu0 0.0
        %485 = vmatprep.subr.mxu0 0.0
        %486 = vmatpush1.msra.mxu0 0.0
        %487 = vmatprep.subr.mxu0 0.0
        %488 = vmatpush1.msra.mxu0 0.0
        %489 = vmatprep.subr.mxu0 0.0
        %490 = vmatpush1.msra.mxu0 0.0
        %491 = vmatprep.subr.mxu0 0.0
        %492 = vmatpush1.msra.mxu0 0.0
        %493 = vmatprep.subr.mxu0 0.0
        %494 = vmatpush1.msra.mxu0 0.0
        %495 = vmatprep.subr.mxu0 0.0
        %496 = vmatpush1.msra.mxu0 0.0
        %497 = vmatprep.subr.mxu0 0.0
        %498 = vmatpush1.msra.mxu0 0.0
        %499 = vmatprep.subr.mxu0 0.0
        %500 = vmatpush1.msra.mxu0 0.0
        %501 = vmatprep.subr.mxu0 0.0
        %502 = vmatpush1.msra.mxu0 0.0
        %503 = vmatprep.subr.mxu0 0.0
        %504 = vmatpush1.msra.mxu0 0.0
        %505 = vmatprep.subr.mxu0 0.0
        %506 = vmatpush1.msra.mxu0 0.0
        %507 = vmatprep.subr.mxu0 0.0
        %508 = vmatpush1.msra.mxu0 0.0
        %509 = vmatprep.subr.mxu0 0.0
        %510 = vmatpush1.msra.mxu0 0.0
        %511 = vmatprep.subr.mxu0 %v475
        %512 = vmatpush1.msra.mxu0 %v472
        %513 = vmatprep.subr.mxu0 %v452
        %514 = vmatpush1.msra.mxu0 %v451
        %515 = vmatprep.subr.mxu0 0.0
        %516 = vmatpush2.msra.mxu0 0.0
        %517 = vmatprep.subr.mxu0 0.0
        %518 = vmatpush2.msra.mxu0 0.0
        %519 = vmatprep.subr.mxu0 0.0
        %520 = vmatpush2.msra.mxu0 0.0
        %521 = vmatprep.subr.mxu0 0.0
        %522 = vmatpush2.msra.mxu0 0.0
        %523 = vmatprep.subr.mxu0 0.0
        %524 = vmatpush2.msra.mxu0 0.0
        %525 = vmatprep.subr.mxu0 0.0
        %526 = vmatpush2.msra.mxu0 0.0
        %527 = vmatprep.subr.mxu0 0.0
        %528 = vmatpush2.msra.mxu0 0.0
        %529 = vmatprep.subr.mxu0 0.0
        %530 = vmatpush2.msra.mxu0 0.0
        %531 = vmatprep.subr.mxu0 0.0
        %532 = vmatpush2.msra.mxu0 0.0
        %533 = vmatprep.subr.mxu0 0.0
        %534 = vmatpush2.msra.mxu0 0.0
        %535 = vmatprep.subr.mxu0 0.0
        %536 = vmatpush2.msra.mxu0 0.0
        %537 = vmatprep.subr.mxu0 0.0
        %538 = vmatpush2.msra.mxu0 0.0
        %539 = vmatprep.subr.mxu0 0.0
        %540 = vmatpush2.msra.mxu0 0.0
        %541 = vmatprep.subr.mxu0 0.0
        %542 = vmatpush2.msra.mxu0 0.0
        %543 = vmatprep.subr.mxu0 0.0
        %544 = vmatpush2.msra.mxu0 0.0
        %545 = vmatprep.subr.mxu0 0.0
        %546 = vmatpush2.msra.mxu0 0.0
        %547 = vmatprep.mubr.f32.mxu0 0.0
        %548 = vmatmul.mubr.f32.gmra.mxu0 %v468
        %v549 = vpop.f32.mrf.mxu0
        %v550 = vadd.f32 %v464, %v549
        %v551 = vpop.f32.mrf.mxu0
        %v552 = vadd.f32 %v464, %v551
        %553 = vdwg.mxu0
        %554 = vmatprep.subr.mxu0 0.0
        %555 = vmatpush1.msra.mxu0 0.0
        %556 = vmatprep.subr.mxu0 0.0
        %557 = vmatpush1.msra.mxu0 0.0
        %558 = vmatprep.subr.mxu0 0.0
        %559 = vmatpush1.msra.mxu0 0.0
        %560 = vmatprep.subr.mxu0 0.0
        %561 = vmatpush1.msra.mxu0 0.0
        %562 = vmatprep.subr.mxu0 0.0
        %563 = vmatpush1.msra.mxu0 0.0
        %564 = vmatprep.subr.mxu0 0.0
        %565 = vmatpush1.msra.mxu0 0.0
        %566 = vmatprep.subr.mxu0 0.0
        %567 = vmatpush1.msra.mxu0 0.0
        %568 = vmatprep.subr.mxu0 0.0
        %569 = vmatpush1.msra.mxu0 0.0
        %570 = vmatprep.subr.mxu0 0.0
        %571 = vmatpush1.msra.mxu0 0.0
        %572 = vmatprep.subr.mxu0 0.0
        %573 = vmatpush1.msra.mxu0 0.0
        %574 = vmatprep.subr.mxu0 0.0
        %575 = vmatpush1.msra.mxu0 0.0
        %576 = vmatprep.subr.mxu0 0.0
        %577 = vmatpush1.msra.mxu0 0.0
        %578 = vmatprep.subr.mxu0 0.0
        %579 = vmatpush1.msra.mxu0 0.0
        %580 = vmatprep.subr.mxu0 0.0
        %581 = vmatpush1.msra.mxu0 0.0
        %582 = vmatprep.subr.mxu0 %v481
        %583 = vmatpush1.msra.mxu0 %v478
        %584 = vmatprep.subr.mxu0 %v454
        %585 = vmatpush1.msra.mxu0 %v453
        %586 = vmatprep.subr.mxu0 0.0
        %587 = vmatpush2.msra.mxu0 0.0
        %588 = vmatprep.subr.mxu0 0.0
        %589 = vmatpush2.msra.mxu0 0.0
        %590 = vmatprep.subr.mxu0 0.0
        %591 = vmatpush2.msra.mxu0 0.0
        %592 = vmatprep.subr.mxu0 0.0
        %593 = vmatpush2.msra.mxu0 0.0
        %594 = vmatprep.subr.mxu0 0.0
        %595 = vmatpush2.msra.mxu0 0.0
        %596 = vmatprep.subr.mxu0 0.0
        %597 = vmatpush2.msra.mxu0 0.0
        %598 = vmatprep.subr.mxu0 0.0
        %599 = vmatpush2.msra.mxu0 0.0
        %600 = vmatprep.subr.mxu0 0.0
        %601 = vmatpush2.msra.mxu0 0.0
        %602 = vmatprep.subr.mxu0 0.0
        %603 = vmatpush2.msra.mxu0 0.0
        %604 = vmatprep.subr.mxu0 0.0
        %605 = vmatpush2.msra.mxu0 0.0
        %606 = vmatprep.subr.mxu0 0.0
        %607 = vmatpush2.msra.mxu0 0.0
        %608 = vmatprep.subr.mxu0 0.0
        %609 = vmatpush2.msra.mxu0 0.0
        %610 = vmatprep.subr.mxu0 0.0
        %611 = vmatpush2.msra.mxu0 0.0
        %612 = vmatprep.subr.mxu0 0.0
        %613 = vmatpush2.msra.mxu0 0.0
        %614 = vmatprep.subr.mxu0 0.0
        %615 = vmatpush2.msra.mxu0 0.0
        %616 = vmatprep.subr.mxu0 0.0
        %617 = vmatpush2.msra.mxu0 0.0
        %618 = vmatprep.mubr.f32.mxu0 0.0
        %619 = vmatmul.mubr.f32.gmra.mxu0 %v468
        %v620 = vpop.f32.mrf.mxu0
        %v621 = vadd.f32 %v464, %v620
        %v622 = vpop.f32.mrf.mxu0
        %v623 = vadd.f32 %v464, %v622
        %624 = vdwg.mxu0
        %v625 = vmax.f32 %v550, 0.0
        %v626 = vmax.f32 %v552, 0.0
        %v627 = vmax.f32 %v621, 0.0
        %v628 = vmax.f32 %v623, 0.0
        %v629 = vld [vmem:[%s1 + $0x48] sm:$0x7]
        %v630 = vld [vmem:[%s2] sm:$0x7]
        %632 = vset.pattern.permute.xlu0 3
        %633 = vperm.xlu0 %632, %v630
        %v634 = vpop.permute.xlu0 %633
        %vm636 = vcmask 39936
        %v638 = vsel %vm636, %v629, 0
        %vm640 = vcmask 1044480
        %v642 = vsel %vm640, %v625, 0
        %v645 = vsel %vm640, %v626, 0
        %v648 = vsel %vm640, %v627, 0
        %v651 = vsel %vm640, %v628, 0
        %653 = vmatprep.subr.mxu0 0.0
        %654 = vmatpush1.msra.mxu0 0.0
        %655 = vmatprep.subr.mxu0 0.0
        %656 = vmatpush1.msra.mxu0 0.0
        %657 = vmatprep.subr.mxu0 0.0
        %658 = vmatpush1.msra.mxu0 0.0
        %659 = vmatprep.subr.mxu0 0.0
        %660 = vmatpush1.msra.mxu0 0.0
        %661 = vmatprep.subr.mxu0 0.0
        %662 = vmatpush1.msra.mxu0 0.0
        %663 = vmatprep.subr.mxu0 0.0
        %664 = vmatpush1.msra.mxu0 0.0
        %665 = vmatprep.subr.mxu0 0.0
        %666 = vmatpush1.msra.mxu0 0.0
        %667 = vmatprep.subr.mxu0 0.0
        %668 = vmatpush1.msra.mxu0 0.0
        %669 = vmatprep.subr.mxu0 0.0
        %670 = vmatpush1.msra.mxu0 0.0
        %671 = vmatprep.subr.mxu0 0.0
        %672 = vmatpush1.msra.mxu0 0.0
        %673 = vmatprep.subr.mxu0 0.0
        %674 = vmatpush1.msra.mxu0 0.0
        %675 = vmatprep.subr.mxu0 0.0
        %676 = vmatpush1.msra.mxu0 0.0
        %677 = vmatprep.subr.mxu0 0.0
        %678 = vmatpush1.msra.mxu0 0.0
        %679 = vmatprep.subr.mxu0 0.0
        %680 = vmatpush1.msra.mxu0 0.0
        %681 = vmatprep.subr.mxu0 0.0
        %682 = vmatpush1.msra.mxu0 0.0
        %683 = vmatprep.subr.mxu0 %v645
        %684 = vmatpush1.msra.mxu0 %v642
        %685 = vmatprep.subr.mxu0 0.0
        %686 = vmatpush2.msra.mxu0 0.0
        %687 = vmatprep.subr.mxu0 0.0
        %688 = vmatpush2.msra.mxu0 0.0
        %689 = vmatprep.subr.mxu0 0.0
        %690 = vmatpush2.msra.mxu0 0.0
        %691 = vmatprep.subr.mxu0 0.0
        %692 = vmatpush2.msra.mxu0 0.0
        %693 = vmatprep.subr.mxu0 0.0
        %694 = vmatpush2.msra.mxu0 0.0
        %695 = vmatprep.subr.mxu0 0.0
        %696 = vmatpush2.msra.mxu0 0.0
        %697 = vmatprep.subr.mxu0 0.0
        %698 = vmatpush2.msra.mxu0 0.0
        %699 = vmatprep.subr.mxu0 0.0
        %700 = vmatpush2.msra.mxu0 0.0
        %701 = vmatprep.subr.mxu0 0.0
        %702 = vmatpush2.msra.mxu0 0.0
        %703 = vmatprep.subr.mxu0 0.0
        %704 = vmatpush2.msra.mxu0 0.0
        %705 = vmatprep.subr.mxu0 0.0
        %706 = vmatpush2.msra.mxu0 0.0
        %707 = vmatprep.subr.mxu0 0.0
        %708 = vmatpush2.msra.mxu0 0.0
        %709 = vmatprep.subr.mxu0 0.0
        %710 = vmatpush2.msra.mxu0 0.0
        %711 = vmatprep.subr.mxu0 0.0
        %712 = vmatpush2.msra.mxu0 0.0
        %713 = vmatprep.subr.mxu0 0.0
        %714 = vmatpush2.msra.mxu0 0.0
        %715 = vmatprep.subr.mxu0 0.0
        %716 = vmatpush2.msra.mxu0 0.0
        %717 = vmatprep.mubr.f32.mxu0 0.0
        %718 = vmatmul.mubr.f32.gmra.mxu0 %v638
        %v719 = vpop.f32.mrf.mxu0
        %v720 = vadd.f32 %v634, %v719
        %v721 = vpop.f32.mrf.mxu0
        %v722 = vadd.f32 %v634, %v721
        %723 = vdwg.mxu0
        %724 = vmatprep.subr.mxu0 0.0
        %725 = vmatpush1.msra.mxu0 0.0
        %726 = vmatprep.subr.mxu0 0.0
        %727 = vmatpush1.msra.mxu0 0.0
        %728 = vmatprep.subr.mxu0 0.0
        %729 = vmatpush1.msra.mxu0 0.0
        %730 = vmatprep.subr.mxu0 0.0
        %731 = vmatpush1.msra.mxu0 0.0
        %732 = vmatprep.subr.mxu0 0.0
        %733 = vmatpush1.msra.mxu0 0.0
        %734 = vmatprep.subr.mxu0 0.0
        %735 = vmatpush1.msra.mxu0 0.0
        %736 = vmatprep.subr.mxu0 0.0
        %737 = vmatpush1.msra.mxu0 0.0
        %738 = vmatprep.subr.mxu0 0.0
        %739 = vmatpush1.msra.mxu0 0.0
        %740 = vmatprep.subr.mxu0 0.0
        %741 = vmatpush1.msra.mxu0 0.0
        %742 = vmatprep.subr.mxu0 0.0
        %743 = vmatpush1.msra.mxu0 0.0
        %744 = vmatprep.subr.mxu0 0.0
        %745 = vmatpush1.msra.mxu0 0.0
        %746 = vmatprep.subr.mxu0 0.0
        %747 = vmatpush1.msra.mxu0 0.0
        %748 = vmatprep.subr.mxu0 0.0
        %749 = vmatpush1.msra.mxu0 0.0
        %750 = vmatprep.subr.mxu0 0.0
        %751 = vmatpush1.msra.mxu0 0.0
        %752 = vmatprep.subr.mxu0 0.0
        %753 = vmatpush1.msra.mxu0 0.0
        %754 = vmatprep.subr.mxu0 %v651
        %755 = vmatpush1.msra.mxu0 %v648
        %756 = vmatprep.subr.mxu0 0.0
        %757 = vmatpush2.msra.mxu0 0.0
        %758 = vmatprep.subr.mxu0 0.0
        %759 = vmatpush2.msra.mxu0 0.0
        %760 = vmatprep.subr.mxu0 0.0
        %761 = vmatpush2.msra.mxu0 0.0
        %762 = vmatprep.subr.mxu0 0.0
        %763 = vmatpush2.msra.mxu0 0.0
        %764 = vmatprep.subr.mxu0 0.0
        %765 = vmatpush2.msra.mxu0 0.0
        %766 = vmatprep.subr.mxu0 0.0
        %767 = vmatpush2.msra.mxu0 0.0
        %768 = vmatprep.subr.mxu0 0.0
        %769 = vmatpush2.msra.mxu0 0.0
        %770 = vmatprep.subr.mxu0 0.0
        %771 = vmatpush2.msra.mxu0 0.0
        %772 = vmatprep.subr.mxu0 0.0
        %773 = vmatpush2.msra.mxu0 0.0
        %774 = vmatprep.subr.mxu0 0.0
        %775 = vmatpush2.msra.mxu0 0.0
        %776 = vmatprep.subr.mxu0 0.0
        %777 = vmatpush2.msra.mxu0 0.0
        %778 = vmatprep.subr.mxu0 0.0
        %779 = vmatpush2.msra.mxu0 0.0
        %780 = vmatprep.subr.mxu0 0.0
        %781 = vmatpush2.msra.mxu0 0.0
        %782 = vmatprep.subr.mxu0 0.0
        %783 = vmatpush2.msra.mxu0 0.0
        %784 = vmatprep.subr.mxu0 0.0
        %785 = vmatpush2.msra.mxu0 0.0
        %786 = vmatprep.subr.mxu0 0.0
        %787 = vmatpush2.msra.mxu0 0.0
        %788 = vmatprep.mubr.f32.mxu0 0.0
        %789 = vmatmul.mubr.f32.gmra.mxu0 %v638
        %v790 = vpop.f32.mrf.mxu0
        %v791 = vadd.f32 %v634, %v790
        %v792 = vpop.f32.mrf.mxu0
        %v793 = vadd.f32 %v634, %v792
        %794 = vdwg.mxu0
        %v799 = vcombine.low %v720, %v722
        %v800 = vcombine.low %v791, %v793
        %803 = vst [vmem:[%s162] sm:$0x77] %v799
        %804 = vst [vmem:[%s162 + $0x8] sm:$0x77] %v800
        %v805 = vld [vmem:[%s1 + $0x60] sm:$0x1f]
        %v806 = vld [vmem:[%s2] sm:$0x1f]
        %808 = vset.pattern.permute.xlu0 4
        %809 = vperm.xlu0 %808, %v806
        %v810 = vpop.permute.xlu0 %809
        %vm812 = vcmask 23552
        %v814 = vsel %vm812, %v805, 0
        %vm816 = vcmask 1042432
        %v817 = vsel %vm816, %v720, 0
        %v819 = vsel %vm816, %v722, 0
        %v821 = vsel %vm816, %v791, 0
        %v823 = vsel %vm816, %v793, 0
        %825 = vmatprep.subr.mxu0 0.0
        %826 = vmatpush1.msra.mxu0 0.0
        %827 = vmatprep.subr.mxu0 0.0
        %828 = vmatpush1.msra.mxu0 0.0
        %829 = vmatprep.subr.mxu0 0.0
        %830 = vmatpush1.msra.mxu0 0.0
        %831 = vmatprep.subr.mxu0 0.0
        %832 = vmatpush1.msra.mxu0 0.0
        %833 = vmatprep.subr.mxu0 0.0
        %834 = vmatpush1.msra.mxu0 0.0
        %835 = vmatprep.subr.mxu0 0.0
        %836 = vmatpush1.msra.mxu0 0.0
        %837 = vmatprep.subr.mxu0 0.0
        %838 = vmatpush1.msra.mxu0 0.0
        %839 = vmatprep.subr.mxu0 0.0
        %840 = vmatpush1.msra.mxu0 0.0
        %841 = vmatprep.subr.mxu0 0.0
        %842 = vmatpush1.msra.mxu0 0.0
        %843 = vmatprep.subr.mxu0 0.0
        %844 = vmatpush1.msra.mxu0 0.0
        %845 = vmatprep.subr.mxu0 0.0
        %846 = vmatpush1.msra.mxu0 0.0
        %847 = vmatprep.subr.mxu0 0.0
        %848 = vmatpush1.msra.mxu0 0.0
        %849 = vmatprep.subr.mxu0 0.0
        %850 = vmatpush1.msra.mxu0 0.0
        %851 = vmatprep.subr.mxu0 0.0
        %852 = vmatpush1.msra.mxu0 0.0
        %853 = vmatprep.subr.mxu0 0.0
        %854 = vmatpush1.msra.mxu0 0.0
        %855 = vmatprep.subr.mxu0 %v819
        %856 = vmatpush1.msra.mxu0 %v817
        %857 = vmatprep.subr.mxu0 0.0
        %858 = vmatpush2.msra.mxu0 0.0
        %859 = vmatprep.subr.mxu0 0.0
        %860 = vmatpush2.msra.mxu0 0.0
        %861 = vmatprep.subr.mxu0 0.0
        %862 = vmatpush2.msra.mxu0 0.0
        %863 = vmatprep.subr.mxu0 0.0
        %864 = vmatpush2.msra.mxu0 0.0
        %865 = vmatprep.subr.mxu0 0.0
        %866 = vmatpush2.msra.mxu0 0.0
        %867 = vmatprep.subr.mxu0 0.0
        %868 = vmatpush2.msra.mxu0 0.0
        %869 = vmatprep.subr.mxu0 0.0
        %870 = vmatpush2.msra.mxu0 0.0
        %871 = vmatprep.subr.mxu0 0.0
        %872 = vmatpush2.msra.mxu0 0.0
        %873 = vmatprep.subr.mxu0 0.0
        %874 = vmatpush2.msra.mxu0 0.0
        %875 = vmatprep.subr.mxu0 0.0
        %876 = vmatpush2.msra.mxu0 0.0
        %877 = vmatprep.subr.mxu0 0.0
        %878 = vmatpush2.msra.mxu0 0.0
        %879 = vmatprep.subr.mxu0 0.0
        %880 = vmatpush2.msra.mxu0 0.0
        %881 = vmatprep.subr.mxu0 0.0
        %882 = vmatpush2.msra.mxu0 0.0
        %883 = vmatprep.subr.mxu0 0.0
        %884 = vmatpush2.msra.mxu0 0.0
        %885 = vmatprep.subr.mxu0 0.0
        %886 = vmatpush2.msra.mxu0 0.0
        %887 = vmatprep.subr.mxu0 0.0
        %888 = vmatpush2.msra.mxu0 0.0
        %889 = vmatprep.mubr.f32.mxu0 0.0
        %890 = vmatmul.mubr.f32.gmra.mxu0 %v814
        %v891 = vpop.f32.mrf.mxu0
        %v892 = vadd.f32 %v810, %v891
        %v893 = vpop.f32.mrf.mxu0
        %v894 = vadd.f32 %v810, %v893
        %895 = vdwg.mxu0
        %896 = vmatprep.subr.mxu0 0.0
        %897 = vmatpush1.msra.mxu0 0.0
        %898 = vmatprep.subr.mxu0 0.0
        %899 = vmatpush1.msra.mxu0 0.0
        %900 = vmatprep.subr.mxu0 0.0
        %901 = vmatpush1.msra.mxu0 0.0
        %902 = vmatprep.subr.mxu0 0.0
        %903 = vmatpush1.msra.mxu0 0.0
        %904 = vmatprep.subr.mxu0 0.0
        %905 = vmatpush1.msra.mxu0 0.0
        %906 = vmatprep.subr.mxu0 0.0
        %907 = vmatpush1.msra.mxu0 0.0
        %908 = vmatprep.subr.mxu0 0.0
        %909 = vmatpush1.msra.mxu0 0.0
        %910 = vmatprep.subr.mxu0 0.0
        %911 = vmatpush1.msra.mxu0 0.0
        %912 = vmatprep.subr.mxu0 0.0
        %913 = vmatpush1.msra.mxu0 0.0
        %914 = vmatprep.subr.mxu0 0.0
        %915 = vmatpush1.msra.mxu0 0.0
        %916 = vmatprep.subr.mxu0 0.0
        %917 = vmatpush1.msra.mxu0 0.0
        %918 = vmatprep.subr.mxu0 0.0
        %919 = vmatpush1.msra.mxu0 0.0
        %920 = vmatprep.subr.mxu0 0.0
        %921 = vmatpush1.msra.mxu0 0.0
        %922 = vmatprep.subr.mxu0 0.0
        %923 = vmatpush1.msra.mxu0 0.0
        %924 = vmatprep.subr.mxu0 0.0
        %925 = vmatpush1.msra.mxu0 0.0
        %926 = vmatprep.subr.mxu0 %v823
        %927 = vmatpush1.msra.mxu0 %v821
        %928 = vmatprep.subr.mxu0 0.0
        %929 = vmatpush2.msra.mxu0 0.0
        %930 = vmatprep.subr.mxu0 0.0
        %931 = vmatpush2.msra.mxu0 0.0
        %932 = vmatprep.subr.mxu0 0.0
        %933 = vmatpush2.msra.mxu0 0.0
        %934 = vmatprep.subr.mxu0 0.0
        %935 = vmatpush2.msra.mxu0 0.0
        %936 = vmatprep.subr.mxu0 0.0
        %937 = vmatpush2.msra.mxu0 0.0
        %938 = vmatprep.subr.mxu0 0.0
        %939 = vmatpush2.msra.mxu0 0.0
        %940 = vmatprep.subr.mxu0 0.0
        %941 = vmatpush2.msra.mxu0 0.0
        %942 = vmatprep.subr.mxu0 0.0
        %943 = vmatpush2.msra.mxu0 0.0
        %944 = vmatprep.subr.mxu0 0.0
        %945 = vmatpush2.msra.mxu0 0.0
        %946 = vmatprep.subr.mxu0 0.0
        %947 = vmatpush2.msra.mxu0 0.0
        %948 = vmatprep.subr.mxu0 0.0
        %949 = vmatpush2.msra.mxu0 0.0
        %950 = vmatprep.subr.mxu0 0.0
        %951 = vmatpush2.msra.mxu0 0.0
        %952 = vmatprep.subr.mxu0 0.0
        %953 = vmatpush2.msra.mxu0 0.0
        %954 = vmatprep.subr.mxu0 0.0
        %955 = vmatpush2.msra.mxu0 0.0
        %956 = vmatprep.subr.mxu0 0.0
        %957 = vmatpush2.msra.mxu0 0.0
        %958 = vmatprep.subr.mxu0 0.0
        %959 = vmatpush2.msra.mxu0 0.0
        %960 = vmatprep.mubr.f32.mxu0 0.0
        %961 = vmatmul.mubr.f32.gmra.mxu0 %v814
        %v962 = vpop.f32.mrf.mxu0
        %v963 = vadd.f32 %v810, %v962
        %v964 = vpop.f32.mrf.mxu0
        %v965 = vadd.f32 %v810, %v964
        %966 = vdwg.mxu0
        %v967 = vmax.f32 %v892, 0.0
        %v968 = vmax.f32 %v894, 0.0
        %v969 = vmax.f32 %v963, 0.0
        %v970 = vmax.f32 %v965, 0.0
        %v971 = vld [vmem:[%s1 + $0x78] sm:$0xff]
        %v972 = vld [vmem:[%s1 + $0x80] sm:$0x3]
        %v973 = vld [vmem:[%s2] sm:$0xff]
        %v974 = vld [vmem:[%s2 + $0x8] sm:$0x3]
        %976 = vset.pattern.permute.xlu0 5
        %977 = vperm.xlu0 %976, %v973
        %v978 = vpop.permute.xlu0 %977
        %981 = vset.pattern.permute.xlu0 5
        %982 = vperm.xlu0 %981, %v974
        %v983 = vpop.permute.xlu0 %982
        %v986 = vsel %vm636, %v971, 0
        %v989 = vsel %vm636, %v972, 0
        %v992 = vsel %vm640, %v967, 0
        %v995 = vsel %vm640, %v968, 0
        %v998 = vsel %vm640, %v969, 0
        %v1001 = vsel %vm640, %v970, 0
        %1003 = vmatprep.subr.mxu0 0.0
        %1004 = vmatpush1.msra.mxu0 0.0
        %1005 = vmatprep.subr.mxu0 0.0
        %1006 = vmatpush1.msra.mxu0 0.0
        %1007 = vmatprep.subr.mxu0 0.0
        %1008 = vmatpush1.msra.mxu0 0.0
        %1009 = vmatprep.subr.mxu0 0.0
        %1010 = vmatpush1.msra.mxu0 0.0
        %1011 = vmatprep.subr.mxu0 0.0
        %1012 = vmatpush1.msra.mxu0 0.0
        %1013 = vmatprep.subr.mxu0 0.0
        %1014 = vmatpush1.msra.mxu0 0.0
        %1015 = vmatprep.subr.mxu0 0.0
        %1016 = vmatpush1.msra.mxu0 0.0
        %1017 = vmatprep.subr.mxu0 0.0
        %1018 = vmatpush1.msra.mxu0 0.0
        %1019 = vmatprep.subr.mxu0 0.0
        %1020 = vmatpush1.msra.mxu0 0.0
        %1021 = vmatprep.subr.mxu0 0.0
        %1022 = vmatpush1.msra.mxu0 0.0
        %1023 = vmatprep.subr.mxu0 0.0
        %1024 = vmatpush1.msra.mxu0 0.0
        %1025 = vmatprep.subr.mxu0 0.0
        %1026 = vmatpush1.msra.mxu0 0.0
        %1027 = vmatprep.subr.mxu0 0.0
        %1028 = vmatpush1.msra.mxu0 0.0
        %1029 = vmatprep.subr.mxu0 0.0
        %1030 = vmatpush1.msra.mxu0 0.0
        %1031 = vmatprep.subr.mxu0 0.0
        %1032 = vmatpush1.msra.mxu0 0.0
        %1033 = vmatprep.subr.mxu0 %v995
        %1034 = vmatpush1.msra.mxu0 %v992
        %1035 = vmatprep.subr.mxu0 0.0
        %1036 = vmatpush2.msra.mxu0 0.0
        %1037 = vmatprep.subr.mxu0 0.0
        %1038 = vmatpush2.msra.mxu0 0.0
        %1039 = vmatprep.subr.mxu0 0.0
        %1040 = vmatpush2.msra.mxu0 0.0
        %1041 = vmatprep.subr.mxu0 0.0
        %1042 = vmatpush2.msra.mxu0 0.0
        %1043 = vmatprep.subr.mxu0 0.0
        %1044 = vmatpush2.msra.mxu0 0.0
        %1045 = vmatprep.subr.mxu0 0.0
        %1046 = vmatpush2.msra.mxu0 0.0
        %1047 = vmatprep.subr.mxu0 0.0
        %1048 = vmatpush2.msra.mxu0 0.0
        %1049 = vmatprep.subr.mxu0 0.0
        %1050 = vmatpush2.msra.mxu0 0.0
        %1051 = vmatprep.subr.mxu0 0.0
        %1052 = vmatpush2.msra.mxu0 0.0
        %1053 = vmatprep.subr.mxu0 0.0
        %1054 = vmatpush2.msra.mxu0 0.0
        %1055 = vmatprep.subr.mxu0 0.0
        %1056 = vmatpush2.msra.mxu0 0.0
        %1057 = vmatprep.subr.mxu0 0.0
        %1058 = vmatpush2.msra.mxu0 0.0
        %1059 = vmatprep.subr.mxu0 0.0
        %1060 = vmatpush2.msra.mxu0 0.0
        %1061 = vmatprep.subr.mxu0 0.0
        %1062 = vmatpush2.msra.mxu0 0.0
        %1063 = vmatprep.subr.mxu0 0.0
        %1064 = vmatpush2.msra.mxu0 0.0
        %1065 = vmatprep.subr.mxu0 0.0
        %1066 = vmatpush2.msra.mxu0 0.0
        %1067 = vmatprep.mubr.f32.mxu0 0.0
        %1068 = vmatmul.mubr.f32.gmra.mxu0 %v986
        %v1069 = vpop.f32.mrf.mxu0
        %v1070 = vadd.f32 %v978, %v1069
        %v1071 = vpop.f32.mrf.mxu0
        %v1072 = vadd.f32 %v978, %v1071
        %1073 = vmatprep.mubr.f32.mxu0 0.0
        %1074 = vmatmul.mubr.f32.gmra.mxu0 %v989
        %v1075 = vpop.f32.mrf.mxu0
        %v1076 = vadd.f32 %v983, %v1075
        %v1077 = vpop.f32.mrf.mxu0
        %v1078 = vadd.f32 %v983, %v1077
        %1079 = vdwg.mxu0
        %1080 = vmatprep.subr.mxu0 0.0
        %1081 = vmatpush1.msra.mxu0 0.0
        %1082 = vmatprep.subr.mxu0 0.0
        %1083 = vmatpush1.msra.mxu0 0.0
        %1084 = vmatprep.subr.mxu0 0.0
        %1085 = vmatpush1.msra.mxu0 0.0
        %1086 = vmatprep.subr.mxu0 0.0
        %1087 = vmatpush1.msra.mxu0 0.0
        %1088 = vmatprep.subr.mxu0 0.0
        %1089 = vmatpush1.msra.mxu0 0.0
        %1090 = vmatprep.subr.mxu0 0.0
        %1091 = vmatpush1.msra.mxu0 0.0
        %1092 = vmatprep.subr.mxu0 0.0
        %1093 = vmatpush1.msra.mxu0 0.0
        %1094 = vmatprep.subr.mxu0 0.0
        %1095 = vmatpush1.msra.mxu0 0.0
        %1096 = vmatprep.subr.mxu0 0.0
        %1097 = vmatpush1.msra.mxu0 0.0
        %1098 = vmatprep.subr.mxu0 0.0
        %1099 = vmatpush1.msra.mxu0 0.0
        %1100 = vmatprep.subr.mxu0 0.0
        %1101 = vmatpush1.msra.mxu0 0.0
        %1102 = vmatprep.subr.mxu0 0.0
        %1103 = vmatpush1.msra.mxu0 0.0
        %1104 = vmatprep.subr.mxu0 0.0
        %1105 = vmatpush1.msra.mxu0 0.0
        %1106 = vmatprep.subr.mxu0 0.0
        %1107 = vmatpush1.msra.mxu0 0.0
        %1108 = vmatprep.subr.mxu0 0.0
        %1109 = vmatpush1.msra.mxu0 0.0
        %1110 = vmatprep.subr.mxu0 %v1001
        %1111 = vmatpush1.msra.mxu0 %v998
        %1112 = vmatprep.subr.mxu0 0.0
        %1113 = vmatpush2.msra.mxu0 0.0
        %1114 = vmatprep.subr.mxu0 0.0
        %1115 = vmatpush2.msra.mxu0 0.0
        %1116 = vmatprep.subr.mxu0 0.0
        %1117 = vmatpush2.msra.mxu0 0.0
        %1118 = vmatprep.subr.mxu0 0.0
        %1119 = vmatpush2.msra.mxu0 0.0
        %1120 = vmatprep.subr.mxu0 0.0
        %1121 = vmatpush2.msra.mxu0 0.0
        %1122 = vmatprep.subr.mxu0 0.0
        %1123 = vmatpush2.msra.mxu0 0.0
        %1124 = vmatprep.subr.mxu0 0.0
        %1125 = vmatpush2.msra.mxu0 0.0
        %1126 = vmatprep.subr.mxu0 0.0
        %1127 = vmatpush2.msra.mxu0 0.0
        %1128 = vmatprep.subr.mxu0 0.0
        %1129 = vmatpush2.msra.mxu0 0.0
        %1130 = vmatprep.subr.mxu0 0.0
        %1131 = vmatpush2.msra.mxu0 0.0
        %1132 = vmatprep.subr.mxu0 0.0
        %1133 = vmatpush2.msra.mxu0 0.0
        %1134 = vmatprep.subr.mxu0 0.0
        %1135 = vmatpush2.msra.mxu0 0.0
        %1136 = vmatprep.subr.mxu0 0.0
        %1137 = vmatpush2.msra.mxu0 0.0
        %1138 = vmatprep.subr.mxu0 0.0
        %1139 = vmatpush2.msra.mxu0 0.0
        %1140 = vmatprep.subr.mxu0 0.0
        %1141 = vmatpush2.msra.mxu0 0.0
        %1142 = vmatprep.subr.mxu0 0.0
        %1143 = vmatpush2.msra.mxu0 0.0
        %1144 = vmatprep.mubr.f32.mxu0 0.0
        %1145 = vmatmul.mubr.f32.gmra.mxu0 %v986
        %v1146 = vpop.f32.mrf.mxu0
        %v1147 = vadd.f32 %v978, %v1146
        %v1148 = vpop.f32.mrf.mxu0
        %v1149 = vadd.f32 %v978, %v1148
        %1150 = vmatprep.mubr.f32.mxu0 0.0
        %1151 = vmatmul.mubr.f32.gmra.mxu0 %v989
        %v1152 = vpop.f32.mrf.mxu0
        %v1153 = vadd.f32 %v983, %v1152
        %v1154 = vpop.f32.mrf.mxu0
        %v1155 = vadd.f32 %v983, %v1154
        %1156 = vdwg.mxu0
        %v1157 = vmax.f32 %v1070, 0.0
        %v1158 = vmax.f32 %v1072, 0.0
        %v1159 = vmax.f32 %v1147, 0.0
        %v1160 = vmax.f32 %v1149, 0.0
        %v1161 = vmax.f32 %v1076, 0.0
        %v1162 = vmax.f32 %v1078, 0.0
        %v1163 = vmax.f32 %v1153, 0.0
        %v1164 = vmax.f32 %v1155, 0.0
        %v1165 = vld [vmem:[%s1 + $0x90] sm:$0xff]
        %v1166 = vld [vmem:[%s1 + $0x98] sm:$0xff]
        %v1167 = vld [vmem:[%s1 + $0xa0] sm:$0xf]
        %v1168 = vld [vmem:[%s2] sm:$0xff]
        %v1169 = vld [vmem:[%s2 + $0x8] sm:$0xff]
        %v1170 = vld [vmem:[%s2 + $0x10] sm:$0xf]
        %1172 = vset.pattern.permute.xlu0 6
        %1173 = vperm.xlu0 %1172, %v1168
        %v1174 = vpop.permute.xlu0 %1173
        %1177 = vset.pattern.permute.xlu0 6
        %1178 = vperm.xlu0 %1177, %v1169
        %v1179 = vpop.permute.xlu0 %1178
        %1182 = vset.pattern.permute.xlu0 6
        %1183 = vperm.xlu0 %1182, %v1170
        %v1184 = vpop.permute.xlu0 %1183
        %v1187 = vsel %vm466, %v1165, 0
        %v1190 = vsel %vm466, %v1166, 0
        %v1193 = vsel %vm466, %v1167, 0
        %v1196 = vsel %vm470, %v1161, 0
        %v1199 = vsel %vm470, %v1162, 0
        %v1202 = vsel %vm470, %v1163, 0
        %v1205 = vsel %vm470, %v1164, 0
        %1207 = vmatprep.subr.mxu0 0.0
        %1208 = vmatpush1.msra.mxu0 0.0
        %1209 = vmatprep.subr.mxu0 0.0
        %1210 = vmatpush1.msra.mxu0 0.0
        %1211 = vmatprep.subr.mxu0 0.0
        %1212 = vmatpush1.msra.mxu0 0.0
        %1213 = vmatprep.subr.mxu0 0.0
        %1214 = vmatpush1.msra.mxu0 0.0
        %1215 = vmatprep.subr.mxu0 0.0
        %1216 = vmatpush1.msra.mxu0 0.0
        %1217 = vmatprep.subr.mxu0 0.0
        %1218 = vmatpush1.msra.mxu0 0.0
        %1219 = vmatprep.subr.mxu0 0.0
        %1220 = vmatpush1.msra.mxu0 0.0
        %1221 = vmatprep.subr.mxu0 0.0
        %1222 = vmatpush1.msra.mxu0 0.0
        %1223 = vmatprep.subr.mxu0 0.0
        %1224 = vmatpush1.msra.mxu0 0.0
        %1225 = vmatprep.subr.mxu0 0.0
        %1226 = vmatpush1.msra.mxu0 0.0
        %1227 = vmatprep.subr.mxu0 0.0
        %1228 = vmatpush1.msra.mxu0 0.0
        %1229 = vmatprep.subr.mxu0 0.0
        %1230 = vmatpush1.msra.mxu0 0.0
        %1231 = vmatprep.subr.mxu0 0.0
        %1232 = vmatpush1.msra.mxu0 0.0
        %1233 = vmatprep.subr.mxu0 0.0
        %1234 = vmatpush1.msra.mxu0 0.0
        %1235 = vmatprep.subr.mxu0 %v1199
        %1236 = vmatpush1.msra.mxu0 %v1196
        %1237 = vmatprep.subr.mxu0 %v1158
        %1238 = vmatpush1.msra.mxu0 %v1157
        %1239 = vmatprep.subr.mxu0 0.0
        %1240 = vmatpush2.msra.mxu0 0.0
        %1241 = vmatprep.subr.mxu0 0.0
        %1242 = vmatpush2.msra.mxu0 0.0
        %1243 = vmatprep.subr.mxu0 0.0
        %1244 = vmatpush2.msra.mxu0 0.0
        %1245 = vmatprep.subr.mxu0 0.0
        %1246 = vmatpush2.msra.mxu0 0.0
        %1247 = vmatprep.subr.mxu0 0.0
        %1248 = vmatpush2.msra.mxu0 0.0
        %1249 = vmatprep.subr.mxu0 0.0
        %1250 = vmatpush2.msra.mxu0 0.0
        %1251 = vmatprep.subr.mxu0 0.0
        %1252 = vmatpush2.msra.mxu0 0.0
        %1253 = vmatprep.subr.mxu0 0.0
        %1254 = vmatpush2.msra.mxu0 0.0
        %1255 = vmatprep.subr.mxu0 0.0
        %1256 = vmatpush2.msra.mxu0 0.0
        %1257 = vmatprep.subr.mxu0 0.0
        %1258 = vmatpush2.msra.mxu0 0.0
        %1259 = vmatprep.subr.mxu0 0.0
        %1260 = vmatpush2.msra.mxu0 0.0
        %1261 = vmatprep.subr.mxu0 0.0
        %1262 = vmatpush2.msra.mxu0 0.0
        %1263 = vmatprep.subr.mxu0 0.0
        %1264 = vmatpush2.msra.mxu0 0.0
        %1265 = vmatprep.subr.mxu0 0.0
        %1266 = vmatpush2.msra.mxu0 0.0
        %1267 = vmatprep.subr.mxu0 0.0
        %1268 = vmatpush2.msra.mxu0 0.0
        %1269 = vmatprep.subr.mxu0 0.0
        %1270 = vmatpush2.msra.mxu0 0.0
        %1271 = vmatprep.mubr.f32.mxu0 0.0
        %1272 = vmatmul.mubr.f32.gmra.mxu0 %v1187
        %v1273 = vpop.f32.mrf.mxu0
        %v1274 = vadd.f32 %v1174, %v1273
        %v1275 = vpop.f32.mrf.mxu0
        %v1276 = vadd.f32 %v1174, %v1275
        %1277 = vmatprep.mubr.f32.mxu0 0.0
        %1278 = vmatmul.mubr.f32.gmra.mxu0 %v1190
        %v1279 = vpop.f32.mrf.mxu0
        %v1280 = vadd.f32 %v1179, %v1279
        %v1281 = vpop.f32.mrf.mxu0
        %v1282 = vadd.f32 %v1179, %v1281
        %1283 = vmatprep.mubr.f32.mxu0 0.0
        %1284 = vmatmul.mubr.f32.gmra.mxu0 %v1193
        %v1285 = vpop.f32.mrf.mxu0
        %v1286 = vadd.f32 %v1184, %v1285
        %v1287 = vpop.f32.mrf.mxu0
        %v1288 = vadd.f32 %v1184, %v1287
        %1289 = vdwg.mxu0
        %1290 = vmatprep.subr.mxu0 0.0
        %1291 = vmatpush1.msra.mxu0 0.0
        %1292 = vmatprep.subr.mxu0 0.0
        %1293 = vmatpush1.msra.mxu0 0.0
        %1294 = vmatprep.subr.mxu0 0.0
        %1295 = vmatpush1.msra.mxu0 0.0
        %1296 = vmatprep.subr.mxu0 0.0
        %1297 = vmatpush1.msra.mxu0 0.0
        %1298 = vmatprep.subr.mxu0 0.0
        %1299 = vmatpush1.msra.mxu0 0.0
        %1300 = vmatprep.subr.mxu0 0.0
        %1301 = vmatpush1.msra.mxu0 0.0
        %1302 = vmatprep.subr.mxu0 0.0
        %1303 = vmatpush1.msra.mxu0 0.0
        %1304 = vmatprep.subr.mxu0 0.0
        %1305 = vmatpush1.msra.mxu0 0.0
        %1306 = vmatprep.subr.mxu0 0.0
        %1307 = vmatpush1.msra.mxu0 0.0
        %1308 = vmatprep.subr.mxu0 0.0
        %1309 = vmatpush1.msra.mxu0 0.0
        %1310 = vmatprep.subr.mxu0 0.0
        %1311 = vmatpush1.msra.mxu0 0.0
        %1312 = vmatprep.subr.mxu0 0.0
        %1313 = vmatpush1.msra.mxu0 0.0
        %1314 = vmatprep.subr.mxu0 0.0
        %1315 = vmatpush1.msra.mxu0 0.0
        %1316 = vmatprep.subr.mxu0 0.0
        %1317 = vmatpush1.msra.mxu0 0.0
        %1318 = vmatprep.subr.mxu0 %v1205
        %1319 = vmatpush1.msra.mxu0 %v1202
        %1320 = vmatprep.subr.mxu0 %v1160
        %1321 = vmatpush1.msra.mxu0 %v1159
        %1322 = vmatprep.subr.mxu0 0.0
        %1323 = vmatpush2.msra.mxu0 0.0
        %1324 = vmatprep.subr.mxu0 0.0
        %1325 = vmatpush2.msra.mxu0 0.0
        %1326 = vmatprep.subr.mxu0 0.0
        %1327 = vmatpush2.msra.mxu0 0.0
        %1328 = vmatprep.subr.mxu0 0.0
        %1329 = vmatpush2.msra.mxu0 0.0
        %1330 = vmatprep.subr.mxu0 0.0
        %1331 = vmatpush2.msra.mxu0 0.0
        %1332 = vmatprep.subr.mxu0 0.0
        %1333 = vmatpush2.msra.mxu0 0.0
        %1334 = vmatprep.subr.mxu0 0.0
        %1335 = vmatpush2.msra.mxu0 0.0
        %1336 = vmatprep.subr.mxu0 0.0
        %1337 = vmatpush2.msra.mxu0 0.0
        %1338 = vmatprep.subr.mxu0 0.0
        %1339 = vmatpush2.msra.mxu0 0.0
        %1340 = vmatprep.subr.mxu0 0.0
        %1341 = vmatpush2.msra.mxu0 0.0
        %1342 = vmatprep.subr.mxu0 0.0
        %1343 = vmatpush2.msra.mxu0 0.0
        %1344 = vmatprep.subr.mxu0 0.0
        %1345 = vmatpush2.msra.mxu0 0.0
        %1346 = vmatprep.subr.mxu0 0.0
        %1347 = vmatpush2.msra.mxu0 0.0
        %1348 = vmatprep.subr.mxu0 0.0
        %1349 = vmatpush2.msra.mxu0 0.0
        %1350 = vmatprep.subr.mxu0 0.0
        %1351 = vmatpush2.msra.mxu0 0.0
        %1352 = vmatprep.subr.mxu0 0.0
        %1353 = vmatpush2.msra.mxu0 0.0
        %1354 = vmatprep.mubr.f32.mxu0 0.0
        %1355 = vmatmul.mubr.f32.gmra.mxu0 %v1187
        %v1356 = vpop.f32.mrf.mxu0
        %v1357 = vadd.f32 %v1174, %v1356
        %v1358 = vpop.f32.mrf.mxu0
        %v1359 = vadd.f32 %v1174, %v1358
        %1360 = vmatprep.mubr.f32.mxu0 0.0
        %1361 = vmatmul.mubr.f32.gmra.mxu0 %v1190
        %v1362 = vpop.f32.mrf.mxu0
        %v1363 = vadd.f32 %v1179, %v1362
        %v1364 = vpop.f32.mrf.mxu0
        %v1365 = vadd.f32 %v1179, %v1364
        %1366 = vmatprep.mubr.f32.mxu0 0.0
        %1367 = vmatmul.mubr.f32.gmra.mxu0 %v1193
        %v1368 = vpop.f32.mrf.mxu0
        %v1369 = vadd.f32 %v1184, %v1368
        %v1370 = vpop.f32.mrf.mxu0
        %v1371 = vadd.f32 %v1184, %v1370
        %1372 = vdwg.mxu0
        %v1373 = vmax.f32 %v1274, 0.0
        %v1374 = vmax.f32 %v1276, 0.0
        %v1375 = vmax.f32 %v1357, 0.0
        %v1376 = vmax.f32 %v1359, 0.0
        %v1377 = vmax.f32 %v1280, 0.0
        %v1378 = vmax.f32 %v1282, 0.0
        %v1379 = vmax.f32 %v1363, 0.0
        %v1380 = vmax.f32 %v1365, 0.0
        %v1381 = vmax.f32 %v1286, 0.0
        %v1382 = vmax.f32 %v1288, 0.0
        %v1383 = vmax.f32 %v1369, 0.0
        %v1384 = vmax.f32 %v1371, 0.0
        %v1385 = vld [vmem:[%s1 + $0xa8] sm:$0xff]
        %v1386 = vld [vmem:[%s1 + $0xb0] sm:$0xff]
        %v1387 = vld [vmem:[%s1 + $0xb8] sm:$0xf]
        %1389 = vset.pattern.permute.xlu0 0
        %1390 = vperm.xlu0 %1389, %v1385
        %v1391 = vpop.permute.xlu0 %1390
        %1394 = vset.pattern.permute.xlu0 0
        %1395 = vperm.xlu0 %1394, %v1386
        %v1396 = vpop.permute.xlu0 %1395
        %1399 = vset.pattern.permute.xlu0 0
        %1400 = vperm.xlu0 %1399, %v1387
        %v1401 = vpop.permute.xlu0 %1400
        %v1403 = vmul.f32 %v1391, %v1373
        %v1404 = vmul.f32 %v1391, %v1374
        %v1405 = vmul.f32 %v1391, %v1375
        %v1406 = vmul.f32 %v1391, %v1376
        %v1407 = vmul.f32 %v1396, %v1377
        %v1408 = vmul.f32 %v1396, %v1378
        %v1409 = vmul.f32 %v1396, %v1379
        %v1410 = vmul.f32 %v1396, %v1380
        %v1411 = vmul.f32 %v1401, %v1381
        %v1412 = vmul.f32 %v1401, %v1382
        %v1413 = vmul.f32 %v1401, %v1383
        %v1414 = vmul.f32 %v1401, %v1384
        %v1415 = vadd.f32 %v1403, %v1407
        %v1416 = vsel %vm284, %v1411, 0.0
        %v1417 = vadd.f32 %v1415, %v1416
        %v1418 = vrot.slane %v1417, 4
        %v1419 = vadd.f32 %v1417, %v1418
        %v1420 = vrot.slane %v1419, 2
        %v1421 = vadd.f32 %v1419, %v1420
        %v1422 = vrot.slane %v1421, 1
        %v1423 = vadd.f32 %v1421, %v1422
        %v1424 = vadd.f32 %v1404, %v1408
        %v1425 = vsel %vm284, %v1412, 0.0
        %v1426 = vadd.f32 %v1424, %v1425
        %v1427 = vrot.slane %v1426, 4
        %v1428 = vadd.f32 %v1426, %v1427
        %v1429 = vrot.slane %v1428, 2
        %v1430 = vadd.f32 %v1428, %v1429
        %v1431 = vrot.slane %v1430, 1
        %v1432 = vadd.f32 %v1430, %v1431
        %v1433 = vadd.f32 %v1405, %v1409
        %v1434 = vsel %vm284, %v1413, 0.0
        %v1435 = vadd.f32 %v1433, %v1434
        %v1436 = vrot.slane %v1435, 4
        %v1437 = vadd.f32 %v1435, %v1436
        %v1438 = vrot.slane %v1437, 2
        %v1439 = vadd.f32 %v1437, %v1438
        %v1440 = vrot.slane %v1439, 1
        %v1441 = vadd.f32 %v1439, %v1440
        %v1442 = vadd.f32 %v1406, %v1410
        %v1443 = vsel %vm284, %v1414, 0.0
        %v1444 = vadd.f32 %v1442, %v1443
        %v1445 = vrot.slane %v1444, 4
        %v1446 = vadd.f32 %v1444, %v1445
        %v1447 = vrot.slane %v1446, 2
        %v1448 = vadd.f32 %v1446, %v1447
        %v1449 = vrot.slane %v1448, 1
        %v1450 = vadd.f32 %v1448, %v1449
        %v1451 = vld [vmem:[%s2] sm:$0x1]
        %1453 = vset.pattern.permute.xlu0 7
        %1454 = vperm.xlu0 %1453, %v1451
        %v1455 = vpop.permute.xlu0 %1454
        %v1457 = vadd.f32 %v1423, %v1455
        %v1458 = vadd.f32 %v1432, %v1455
        %v1459 = vadd.f32 %v1441, %v1455
        %v1460 = vadd.f32 %v1450, %v1455
        %v1465 = vcombine.low %v1457, %v1458
        %v1466 = vcombine.low %v1459, %v1460
        %v1468 = vunpack.c.l.s4 1966171168
        %v1469 = vunpack.c.0.s8 %v1468
        %v1470 = vlaneseq
        %v1471 = vshrl.u32 %v1470, 7
        %v1472 = vsub.s32 %v1469, %v1471
        %v1473 = vrot.slane %v1465, %v1472
        %v1475 = vunpack.c.l.s4 1966171168
        %v1476 = vunpack.c.0.s8 %v1475
        %v1477 = vlaneseq
        %v1478 = vshrl.u32 %v1477, 7
        %v1479 = vsub.s32 %v1476, %v1478
        %v1480 = vrot.slane %v1466, %v1479
        %v1481 = vcombine.low %v1473, %v1480
        %v1483 = vunpack.c.l.s4 1966171168
        %v1484 = vunpack.c.0.s8 %v1483
        %v1485 = vlaneseq
        %v1486 = vshrl.u32 %v1485, 7
        %v1487 = vsub.s32 %v1484, %v1486
        %v1488 = vrot.slane %v1481, %v1487
        %v1490 = vlaneseq
        %vm1491 = vcmp.ge.s32.totalorder %v1490, 0
        %vm1492 = vcmp.lt.s32.totalorder %v1490, 512
        %vm1493 = vmand %vm1491, %vm1492
        %s1494 = scalar_lea.vmem %s162, 3 [#allocation2]
        %1495 = vst.msk [vmem:[%s1494] ss:$4 sm:$0xf] %vm1493, %v1488
        %s1496 = sand.u32 %s93, 1
        %s1497 = scalar_lea.sflag [#allocation3], %s1496
        %s1498 = sand.u32 %s93, 1
        %s1499 = smul.addr %s1498, 16
        %s1500 = scalar_lea.vmem [#allocation2], %s1499
        // Predicated region
        $region33: #{tpu_custom_call.1} parent=31 // pred_check
          %p1501 = pneg %p103
        $region34: #{tpu_custom_call.1} parent=31 // pred_check_branch
          %1503 = sbr.rel (%p1501) target = $region36
        $region35: #{tpu_custom_call.1} parent=31 // pred_region
          %s1504 = smul.u32 4, %s17
          %s1506 = ssub.s32 256, 256
          %1507 = vsyncadd %s1497, %s1506
          %s1508 = smul.addr %s1504, 64
          %s1509 = scalar_lea.hbm %s3, %s1508
          %s1511 = sshll.u32 %s1500, 4
          %s1512 = int_to_ptr.vmem [resolvable:$true] %s1511
          %1514 = dma.vmem_to_hbm [thread:$0]  %s1512, 256, %s1509, %s1497
        $region36: #{tpu_custom_call.1} parent=31 // pred_fallthru
          _
      $region32: #{tpu_custom_call.1} parent=5 // pred_fallthru
        _
      %p1515 = scmp.le.s32.totalorder 2, %s12
      // Predicated region
      $region37: #{tpu_custom_call.1} parent=5 // pred_check
        %p1516 = pneg %p1515
      $region38: #{tpu_custom_call.1} parent=5 // pred_check_branch
        %1518 = sbr.rel (%p1516) target = $region40
      $region39: #{tpu_custom_call.1} parent=5 // pred_region
        %s1519 = ssub.s32 %s12, 2
        // Predicated region
        $region41: #{tpu_custom_call.1} parent=39 // pred_check
          %p1520 = pneg %p109
        $region42: #{tpu_custom_call.1} parent=39 // pred_check_branch
          %1522 = sbr.rel (%p1520) target = $region44
        $region43: #{tpu_custom_call.1} parent=39 // pred_region
          %s1523 = sand.u32 %s94, 1
          %s1524 = scalar_lea.sflag [#allocation3], %s1523
          %s1525 = sand.u32 %s94, 1
          %s1526 = smul.addr %s1525, 16
          %s1527 = scalar_lea.vmem [#allocation2], %s1526
          %1528 = dma.done %s1524, 256
        $region44: #{tpu_custom_call.1} parent=39 // pred_fallthru
          _
      $region40: #{tpu_custom_call.1} parent=5 // pred_fallthru
        _
    $region6: #{tpu_custom_call.1} parent=1 // loop_footer
      %s16 = sadd.s32 1, %s12
    $region7: #{tpu_custom_call.1} parent=1 // loop_footer_branch
      %11 = sbr.rel target = $region3
    $region8: #{tpu_custom_call.1} parent=1 // loop_exit
      _
    %1529 = vsyncpa [#allocation3], 1
    %s1530 = scalar_lea.sflag [#allocation3], 1
    %1531 = vsyncpa %s1530, 1

</llo_original>
